<compile_context>
chip_gen: v6e
topology: v6e:2x2x1
jax: 0.10.0
libtpu: 0.0.40
codegen_flags: <defaults>
</compile_context>

<pallas_src>
import functools

import jax
import jax.numpy as jnp
from jax.experimental import pallas as pl
from jax.experimental.pallas import tpu as pltpu


# ----------------------------------------------------------------------------
# Single fused Pose_RNN forward kernel
# ----------------------------------------------------------------------------
def _pose_rnn_kernel(*refs, S, B, H, has_fuse):
    if has_fuse:
        (x_ref, fw_ref, fb_ref,
         wih0_ref, whh0_ref, b0_ref,
         wih1_ref, whh1_ref, b1_ref,
         h0_ref, c0_ref,
         rw1_ref, rb1_ref, rw2_ref, rb2_ref,
         pose_ref, hn_ref, cn_ref,
         hbuf_ref) = refs
    else:
        (x_ref,
         wih0_ref, whh0_ref, b0_ref,
         wih1_ref, whh1_ref, b1_ref,
         h0_ref, c0_ref,
         rw1_ref, rb1_ref, rw2_ref, rb2_ref,
         pose_ref, hn_ref, cn_ref,
         hbuf_ref) = refs
        fw_ref = fb_ref = None

    x = x_ref[...]                                            # (S*B, F) f32

    # Fusion_module 'soft': elementwise gate from a bare Linear (matches ref).
    if has_fuse:
        gate = jnp.dot(x.astype(jnp.bfloat16), fw_ref[...],
                       preferred_element_type=jnp.float32) + fb_ref[...]
        x = x * gate

    def run_layer(xg, whh, h, c):
        # xg: (S*B, 4H) f32 (input projection + folded biases, all timesteps),
        # whh: (H, 4H) bf16, h/c: (B, H) f32.
        # Static unroll over S (trace-time constants -> no dynamic indexing,
        # no per-step grid overhead, LLO sees the whole recurrence).
        for t in range(S):
            gates = xg[t * B:(t + 1) * B, :] + jnp.dot(
                h.astype(jnp.bfloat16), whh,
                preferred_element_type=jnp.float32)           # (B, 4H) f32
            sg = jax.nn.sigmoid(gates)                        # full-vreg EUP
            th = jnp.tanh(gates)                              # full-vreg EUP
            i_g = sg[:, 0:H]
            f_g = sg[:, H:2 * H]
            g_g = th[:, 2 * H:3 * H]
            o_g = sg[:, 3 * H:4 * H]
            c = f_g * c + i_g * g_g
            h = o_g * jnp.tanh(c)
            hbuf_ref[t * B:(t + 1) * B, :] = h                # VMEM buffer only
        return h, c

    # ---- layer 0: hoisted all-timestep input projection + recurrence --------
    xg0 = jnp.dot(x.astype(jnp.bfloat16), wih0_ref[...],
                  preferred_element_type=jnp.float32) + b0_ref[...]
    h0_f, c0_f = run_layer(xg0, whh0_ref[...], h0_ref[0], c0_ref[0])
    hn_ref[0] = h0_f
    cn_ref[0] = c0_f

    # ---- layer 1 -------------------------------------------------------------
    y0 = hbuf_ref[...]                                        # (S*B, H) layer-0 hidden slab
    xg1 = jnp.dot(y0.astype(jnp.bfloat16), wih1_ref[...],
                  preferred_element_type=jnp.float32) + b1_ref[...]
    h1_f, c1_f = run_layer(xg1, whh1_ref[...], h0_ref[1], c0_ref[1])
    hn_ref[1] = h1_f
    cn_ref[1] = c1_f

    # ---- fused twin regressors: Linear(H,128)+LeakyReLU(0.1)+Linear(128,3) x2
    # first layers concatenated (H -> 256), second layers block-diagonal
    # (256 -> 6, lane-padded to 128 for a dense store).
    feat = hbuf_ref[...]                                      # layer-1 hidden slab
    hid = jnp.dot(feat.astype(jnp.bfloat16), rw1_ref[...],
                  preferred_element_type=jnp.float32) + rb1_ref[...]
    hid = jnp.where(hid > 0, hid, 0.1 * hid)                  # LeakyReLU(0.1)
    pose = jnp.dot(hid.astype(jnp.bfloat16), rw2_ref[...],
                   preferred_element_type=jnp.float32) + rb2_ref[...]
    pose_ref[...] = pose


# ----------------------------------------------------------------------------
# Parameters (pre-transposed / pre-padded / bias-folded / bf16 at init)
# ----------------------------------------------------------------------------
def _randn(key, shape, scale=0.05):
    return scale * jax.random.normal(key, shape, dtype=jnp.float32)


def init_params(key, opt):
    H = opt["rnn_hidden_size"]
    F = opt["v_f_len"] + opt["i_f_len"]
    ks = iter(jax.random.split(key, 24))
    params = {}

    # 2-layer LSTM (PyTorch gate order i, f, g, o); b_ih + b_hh folded.
    for l in range(2):
        cin = F if l == 0 else H
        w_ih = _randn(next(ks), (4 * H, cin))
        w_hh = _randn(next(ks), (4 * H, H))
        b_ih = _randn(next(ks), (4 * H,))
        b_hh = _randn(next(ks), (4 * H,))
        params[f"lstm_l{l}"] = dict(
            w_ih_t=jnp.transpose(w_ih).astype(jnp.bfloat16),   # (cin, 4H)
            w_hh_t=jnp.transpose(w_hh).astype(jnp.bfloat16),   # (H, 4H)
            bias=(b_ih + b_hh).reshape(1, 4 * H).astype(jnp.float32),
        )

    # regressor_t / regressor_q fused.
    w1_t = _randn(next(ks), (128, H)); b1_t = _randn(next(ks), (128,))
    w2_t = _randn(next(ks), (3, 128)); b2_t = _randn(next(ks), (3,))
    w1_q = _randn(next(ks), (128, H)); b1_q = _randn(next(ks), (128,))
    w2_q = _randn(next(ks), (3, 128)); b2_q = _randn(next(ks), (3,))
    w1 = jnp.concatenate([w1_t.T, w1_q.T], axis=1)             # (H, 256)
    b1 = jnp.concatenate([b1_t, b1_q]).reshape(1, 256)
    w2 = jnp.zeros((256, 128), jnp.float32)                    # N padded 6 -> 128
    w2 = w2.at[:128, 0:3].set(w2_t.T).at[128:, 3:6].set(w2_q.T)
    b2 = jnp.zeros((1, 128), jnp.float32).at[0, 0:3].set(b2_t).at[0, 3:6].set(b2_q)
    params["regressor"] = dict(
        w1_t=w1.astype(jnp.bfloat16), b1=b1.astype(jnp.float32),
        w2_t=w2.astype(jnp.bfloat16), b2=b2,
    )

    if opt.get("fuse_method", "cat") == "soft":
        w = _randn(next(ks), (F, F))
        b = _randn(next(ks), (F,))
        params["fuse"] = dict(w_t=jnp.transpose(w).astype(jnp.bfloat16),
                              b=b.reshape(1, F).astype(jnp.float32))
    return params


# ----------------------------------------------------------------------------
# Pose_RNN forward
# ----------------------------------------------------------------------------
def pose_rnn_forward(params, opt, fv, fv_alter, fi, dec, prev=None):
    B, S, _ = fv.shape
    H = opt["rnn_hidden_size"]
    F = opt["v_f_len"] + opt["i_f_len"]
    method = opt.get("fuse_method", "cat")
    if method not in ("cat", "soft"):
        raise NotImplementedError(method)  # TODO(synk): 'hard' gumbel / cross-att
    has_fuse = method == "soft"

    # visual selection gate + feature concat (elementwise XLA glue)
    if fv_alter is not None:
        v_in = fv * dec[:, :, :1] + fv_alter * dec[:, :, -1:]
    else:
        v_in = fv
    feat_cat = jnp.concatenate([v_in, fi], axis=-1)            # (B, S, F)
    # time-major flattened rows (row = t*B + b) for the in-kernel recurrence
    x_tm = jnp.transpose(feat_cat, (1, 0, 2)).reshape(S * B, F)

    if prev is None:
        h0 = jnp.zeros((2, B, H), jnp.float32)
        c0 = jnp.zeros((2, B, H), jnp.float32)
    else:
        h0 = jnp.transpose(prev[0], (1, 0, 2)).astype(jnp.float32)
        c0 = jnp.transpose(prev[1], (1, 0, 2)).astype(jnp.float32)

    rg = params["regressor"]
    NP = rg["w2_t"].shape[1]                                   # padded pose lanes (128)

    in_list = [x_tm]
    if has_fuse:
        in_list += [params["fuse"]["w_t"], params["fuse"]["b"]]
    for l in (0, 1):
        p = params[f"lstm_l{l}"]
        in_list += [p["w_ih_t"], p["w_hh_t"], p["bias"]]
    in_list += [h0, c0, rg["w1_t"], rg["b1"], rg["w2_t"], rg["b2"]]

    flops = 2 * S * B * (F * 4 * H + 3 * H * 4 * H + H * 256 + 256 * NP)
    if has_fuse:
        flops += 2 * S * B * F * F
    bytes_in = sum(int(a.size) * a.dtype.itemsize for a in in_list)
    bytes_out = S * B * NP * 4 + 2 * (2 * B * H * 4)
    cost = pl.CostEstimate(flops=flops,
                           transcendentals=2 * S * B * 9 * H,
                           bytes_accessed=bytes_in + bytes_out)

    pose_p, h_n, c_n = pl.pallas_call(
        functools.partial(_pose_rnn_kernel, S=S, B=B, H=H, has_fuse=has_fuse),
        out_shape=(jax.ShapeDtypeStruct((S * B, NP), jnp.float32),
                   jax.ShapeDtypeStruct((2, B, H), jnp.float32),
                   jax.ShapeDtypeStruct((2, B, H), jnp.float32)),
        scratch_shapes=[pltpu.VMEM((S * B, H), jnp.float32)],  # per-layer hidden slab
        cost_estimate=cost,
    )(*in_list)

    # rnn_drop_out / rnn_dropout_between: identity (eval mode)
    pose = pose_p[:, :6].reshape(S, B, 6).transpose(1, 0, 2)   # (B, S, 6)
    hc = (jnp.transpose(h_n, (1, 0, 2)), jnp.transpose(c_n, (1, 0, 2)))  # (B, 2, H)
    return pose, hc


# ----------------------------------------------------------------------------
if __name__ == "__main__":
    opt = dict(v_f_len=96, i_f_len=32, rnn_hidden_size=32,
               rnn_dropout_between=0.0, rnn_dropout_out=0.0,
               fuse_method="cat", cross_fusion=False, seq_len=9, nhead=1)

    B, S = 2, 8
    key = jax.random.PRNGKey(0)
    kp, k1, k2, k3, k4 = jax.random.split(key, 5)
    params = init_params(kp, opt)

    fv = jax.random.normal(k1, (B, S, opt["v_f_len"]), dtype=jnp.float32)
    fv_alter = jax.random.normal(k2, (B, S, opt["v_f_len"]), dtype=jnp.float32)
    fi = jax.random.normal(k3, (B, S, opt["i_f_len"]), dtype=jnp.float32)
    dec = jax.nn.softmax(jax.random.normal(k4, (B, S, 2), dtype=jnp.float32), -1)

    fwd = jax.jit(lambda a, b, c, d: pose_rnn_forward(params, opt, a, b, c, d, None))
    fwd_prev = jax.jit(lambda a, b, c, d, h, cc:
                       pose_rnn_forward(params, opt, a, b, c, d, (h, cc)))

    pose, hc = fwd(fv, fv_alter, fi, dec)
    jax.block_until_ready((pose, hc))
    assert pose.shape == (B, S, 6), pose.shape
    assert hc[0].shape == (B, 2, opt["rnn_hidden_size"]), hc[0].shape
    assert hc[1].shape == (B, 2, opt["rnn_hidden_size"]), hc[1].shape
    assert jnp.all(jnp.isfinite(pose))
    assert jnp.all(jnp.isfinite(hc[0])) and jnp.all(jnp.isfinite(hc[1]))

    # second step feeding the returned hidden state back in (prev path)
    pose2, hc2 = fwd_prev(fv, fv_alter, fi, dec, hc[0], hc[1])
    jax.block_until_ready((pose2, hc2))
    assert pose2.shape == (B, S, 6)
    assert jnp.all(jnp.isfinite(pose2))

    # 'soft' fusion path (gate GEMM fused into the same kernel)
    opt_soft = dict(opt, fuse_method="soft")
    params_soft = init_params(kp, opt_soft)
    fwd_soft = jax.jit(lambda a, b, c, d:
                       pose_rnn_forward(params_soft, opt_soft, a, b, c, d, None))
    pose3, hc3 = fwd_soft(fv, fv_alter, fi, dec)
    jax.block_until_ready((pose3, hc3))
    assert pose3.shape == (B, S, 6)
    assert jnp.all(jnp.isfinite(pose3))

    print("KERNEL_OK")
</pallas_src>

<mosaic_0001>
module attributes {stable_mosaic.version = 11 : i64} {
  func.func @_pose_rnn_kernel(%arg0: memref<16x128xf32, #tpu.memory_space<vmem>>, %arg1: memref<128x128xbf16, #tpu.memory_space<vmem>>, %arg2: memref<32x128xbf16, #tpu.memory_space<vmem>>, %arg3: memref<1x128xf32, #tpu.memory_space<vmem>>, %arg4: memref<32x128xbf16, #tpu.memory_space<vmem>>, %arg5: memref<32x128xbf16, #tpu.memory_space<vmem>>, %arg6: memref<1x128xf32, #tpu.memory_space<vmem>>, %arg7: memref<2x2x32xf32, #tpu.memory_space<vmem>>, %arg8: memref<2x2x32xf32, #tpu.memory_space<vmem>>, %arg9: memref<32x256xbf16, #tpu.memory_space<vmem>>, %arg10: memref<1x256xf32, #tpu.memory_space<vmem>>, %arg11: memref<256x128xbf16, #tpu.memory_space<vmem>>, %arg12: memref<1x128xf32, #tpu.memory_space<vmem>>, %arg13: memref<16x128xf32, #tpu.memory_space<vmem>>, %arg14: memref<2x2x32xf32, #tpu.memory_space<vmem>>, %arg15: memref<2x2x32xf32, #tpu.memory_space<vmem>>, %arg16: memref<16x32xf32, #tpu.memory_space<vmem>>) attributes {dimension_semantics = [], scalar_prefetch = 0 : i64, scratch_operands = 1 : i64, tpu.core_type = #tpu.core_type<tc>} {
    %c0 = arith.constant 0 : index
    %c0_0 = arith.constant 0 : index
    %0 = vector.load %arg0[%c0, %c0_0] : memref<16x128xf32, #tpu.memory_space<vmem>>, vector<16x128xf32>
    %1 = arith.truncf %0 : vector<16x128xf32> to vector<16x128xbf16>
    %c0_1 = arith.constant 0 : index
    %c0_2 = arith.constant 0 : index
    %2 = vector.load %arg1[%c0_1, %c0_2] : memref<128x128xbf16, #tpu.memory_space<vmem>>, vector<128x128xbf16>
    %cst = arith.constant dense<0.000000e+00> : vector<16x128xf32>
    %3 = tpu.matmul %1, %2, %cst {dimension_numbers = #tpu.dot_dimension_numbers<[1], [0], [0], [1], [0, 0, 1, 1], [], []>} : vector<16x128xbf16>, vector<128x128xbf16>, vector<16x128xf32> -> vector<16x128xf32>
    %c0_3 = arith.constant 0 : index
    %c0_4 = arith.constant 0 : index
    %4 = vector.load %arg3[%c0_3, %c0_4] : memref<1x128xf32, #tpu.memory_space<vmem>>, vector<1x128xf32>
    %5 = vector.broadcast %4 : vector<1x128xf32> to vector<16x128xf32>
    %6 = arith.addf %3, %5 : vector<16x128xf32>
    %c0_5 = arith.constant 0 : index
    %c0_6 = arith.constant 0 : index
    %7 = vector.load %arg2[%c0_5, %c0_6] : memref<32x128xbf16, #tpu.memory_space<vmem>>, vector<32x128xbf16>
    %c0_7 = arith.constant 0 : index
    %c0_8 = arith.constant 0 : index
    %c0_9 = arith.constant 0 : index
    %8 = vector.load %arg7[%c0_7, %c0_8, %c0_9] : memref<2x2x32xf32, #tpu.memory_space<vmem>>, vector<1x2x32xf32>
    %9 = vector.shape_cast %8 : vector<1x2x32xf32> to vector<2x32xf32>
    %c0_10 = arith.constant 0 : index
    %c0_11 = arith.constant 0 : index
    %c0_12 = arith.constant 0 : index
    %10 = vector.load %arg8[%c0_10, %c0_11, %c0_12] : memref<2x2x32xf32, #tpu.memory_space<vmem>>, vector<1x2x32xf32>
    %11 = vector.shape_cast %10 : vector<1x2x32xf32> to vector<2x32xf32>
    %12 = vector.extract_strided_slice %6 {offsets = [0, 0], sizes = [2, 128], strides = [1, 1]} : vector<16x128xf32> to vector<2x128xf32>
    %13 = arith.truncf %9 : vector<2x32xf32> to vector<2x32xbf16>
    %cst_13 = arith.constant dense<0.000000e+00> : vector<2x128xf32>
    %14 = tpu.matmul %13, %7, %cst_13 {dimension_numbers = #tpu.dot_dimension_numbers<[1], [0], [0], [1], [0, 0, 1, 1], [], []>} : vector<2x32xbf16>, vector<32x128xbf16>, vector<2x128xf32> -> vector<2x128xf32>
    %15 = arith.addf %12, %14 : vector<2x128xf32>
    %16 = arith.negf %15 : vector<2x128xf32>
    %17 = math.exp %16 : vector<2x128xf32>
    %cst_14 = arith.constant 1.000000e+00 : f32
    %18 = vector.broadcast %cst_14 : f32 to vector<2x128xf32>
    %19 = arith.addf %18, %17 : vector<2x128xf32>
    %20 = arith.divf %18, %19 : vector<2x128xf32>
    %21 = math.tanh %15 : vector<2x128xf32>
    %22 = vector.extract_strided_slice %20 {offsets = [0, 0], sizes = [2, 32], strides = [1, 1]} : vector<2x128xf32> to vector<2x32xf32>
    %23 = vector.extract_strided_slice %20 {offsets = [0, 32], sizes = [2, 32], strides = [1, 1]} : vector<2x128xf32> to vector<2x32xf32>
    %24 = vector.extract_strided_slice %21 {offsets = [0, 64], sizes = [2, 32], strides = [1, 1]} : vector<2x128xf32> to vector<2x32xf32>
    %25 = vector.extract_strided_slice %20 {offsets = [0, 96], sizes = [2, 32], strides = [1, 1]} : vector<2x128xf32> to vector<2x32xf32>
    %26 = arith.mulf %23, %11 : vector<2x32xf32>
    %27 = arith.mulf %22, %24 : vector<2x32xf32>
    %28 = arith.addf %26, %27 : vector<2x32xf32>
    %29 = math.tanh %28 : vector<2x32xf32>
    %30 = arith.mulf %25, %29 : vector<2x32xf32>
    %c0_15 = arith.constant 0 : index
    %c0_16 = arith.constant 0 : index
    %31 = vector.load %arg16[%c0_15, %c0_16] : memref<16x32xf32, #tpu.memory_space<vmem>>, vector<2x32xf32>
    tpu.vector_store %arg16[%c0_15, %c0_16], %30 {strides = array<i32>} : memref<16x32xf32, #tpu.memory_space<vmem>>, vector<2x32xf32>,
    %32 = vector.extract_strided_slice %6 {offsets = [2, 0], sizes = [2, 128], strides = [1, 1]} : vector<16x128xf32> to vector<2x128xf32>
    %33 = arith.truncf %30 : vector<2x32xf32> to vector<2x32xbf16>
    %cst_17 = arith.constant dense<0.000000e+00> : vector<2x128xf32>
    %34 = tpu.matmul %33, %7, %cst_17 {dimension_numbers = #tpu.dot_dimension_numbers<[1], [0], [0], [1], [0, 0, 1, 1], [], []>} : vector<2x32xbf16>, vector<32x128xbf16>, vector<2x128xf32> -> vector<2x128xf32>
    %35 = arith.addf %32, %34 : vector<2x128xf32>
    %36 = arith.negf %35 : vector<2x128xf32>
    %37 = math.exp %36 : vector<2x128xf32>
    %cst_18 = arith.constant 1.000000e+00 : f32
    %38 = vector.broadcast %cst_18 : f32 to vector<2x128xf32>
    %39 = arith.addf %38, %37 : vector<2x128xf32>
    %40 = arith.divf %38, %39 : vector<2x128xf32>
    %41 = math.tanh %35 : vector<2x128xf32>
    %42 = vector.extract_strided_slice %40 {offsets = [0, 0], sizes = [2, 32], strides = [1, 1]} : vector<2x128xf32> to vector<2x32xf32>
    %43 = vector.extract_strided_slice %40 {offsets = [0, 32], sizes = [2, 32], strides = [1, 1]} : vector<2x128xf32> to vector<2x32xf32>
    %44 = vector.extract_strided_slice %41 {offsets = [0, 64], sizes = [2, 32], strides = [1, 1]} : vector<2x128xf32> to vector<2x32xf32>
    %45 = vector.extract_strided_slice %40 {offsets = [0, 96], sizes = [2, 32], strides = [1, 1]} : vector<2x128xf32> to vector<2x32xf32>
    %46 = arith.mulf %43, %28 : vector<2x32xf32>
    %47 = arith.mulf %42, %44 : vector<2x32xf32>
    %48 = arith.addf %46, %47 : vector<2x32xf32>
    %49 = math.tanh %48 : vector<2x32xf32>
    %50 = arith.mulf %45, %49 : vector<2x32xf32>
    %c2 = arith.constant 2 : index
    %c0_19 = arith.constant 0 : index
    %51 = vector.load %arg16[%c2, %c0_19] : memref<16x32xf32, #tpu.memory_space<vmem>>, vector<2x32xf32>
    tpu.vector_store %arg16[%c2, %c0_19], %50 {strides = array<i32>} : memref<16x32xf32, #tpu.memory_space<vmem>>, vector<2x32xf32>,
    %52 = vector.extract_strided_slice %6 {offsets = [4, 0], sizes = [2, 128], strides = [1, 1]} : vector<16x128xf32> to vector<2x128xf32>
    %53 = arith.truncf %50 : vector<2x32xf32> to vector<2x32xbf16>
    %cst_20 = arith.constant dense<0.000000e+00> : vector<2x128xf32>
    %54 = tpu.matmul %53, %7, %cst_20 {dimension_numbers = #tpu.dot_dimension_numbers<[1], [0], [0], [1], [0, 0, 1, 1], [], []>} : vector<2x32xbf16>, vector<32x128xbf16>, vector<2x128xf32> -> vector<2x128xf32>
    %55 = arith.addf %52, %54 : vector<2x128xf32>
    %56 = arith.negf %55 : vector<2x128xf32>
    %57 = math.exp %56 : vector<2x128xf32>
    %cst_21 = arith.constant 1.000000e+00 : f32
    %58 = vector.broadcast %cst_21 : f32 to vector<2x128xf32>
    %59 = arith.addf %58, %57 : vector<2x128xf32>
    %60 = arith.divf %58, %59 : vector<2x128xf32>
    %61 = math.tanh %55 : vector<2x128xf32>
    %62 = vector.extract_strided_slice %60 {offsets = [0, 0], sizes = [2, 32], strides = [1, 1]} : vector<2x128xf32> to vector<2x32xf32>
    %63 = vector.extract_strided_slice %60 {offsets = [0, 32], sizes = [2, 32], strides = [1, 1]} : vector<2x128xf32> to vector<2x32xf32>
    %64 = vector.extract_strided_slice %61 {offsets = [0, 64], sizes = [2, 32], strides = [1, 1]} : vector<2x128xf32> to vector<2x32xf32>
    %65 = vector.extract_strided_slice %60 {offsets = [0, 96], sizes = [2, 32], strides = [1, 1]} : vector<2x128xf32> to vector<2x32xf32>
    %66 = arith.mulf %63, %48 : vector<2x32xf32>
    %67 = arith.mulf %62, %64 : vector<2x32xf32>
    %68 = arith.addf %66, %67 : vector<2x32xf32>
    %69 = math.tanh %68 : vector<2x32xf32>
    %70 = arith.mulf %65, %69 : vector<2x32xf32>
    %c4 = arith.constant 4 : index
    %c0_22 = arith.constant 0 : index
    %71 = vector.load %arg16[%c4, %c0_22] : memref<16x32xf32, #tpu.memory_space<vmem>>, vector<2x32xf32>
    tpu.vector_store %arg16[%c4, %c0_22], %70 {strides = array<i32>} : memref<16x32xf32, #tpu.memory_space<vmem>>, vector<2x32xf32>,
    %72 = vector.extract_strided_slice %6 {offsets = [6, 0], sizes = [2, 128], strides = [1, 1]} : vector<16x128xf32> to vector<2x128xf32>
    %73 = arith.truncf %70 : vector<2x32xf32> to vector<2x32xbf16>
    %cst_23 = arith.constant dense<0.000000e+00> : vector<2x128xf32>
    %74 = tpu.matmul %73, %7, %cst_23 {dimension_numbers = #tpu.dot_dimension_numbers<[1], [0], [0], [1], [0, 0, 1, 1], [], []>} : vector<2x32xbf16>, vector<32x128xbf16>, vector<2x128xf32> -> vector<2x128xf32>
    %75 = arith.addf %72, %74 : vector<2x128xf32>
    %76 = arith.negf %75 : vector<2x128xf32>
    %77 = math.exp %76 : vector<2x128xf32>
    %cst_24 = arith.constant 1.000000e+00 : f32
    %78 = vector.broadcast %cst_24 : f32 to vector<2x128xf32>
    %79 = arith.addf %78, %77 : vector<2x128xf32>
    %80 = arith.divf %78, %79 : vector<2x128xf32>
    %81 = math.tanh %75 : vector<2x128xf32>
    %82 = vector.extract_strided_slice %80 {offsets = [0, 0], sizes = [2, 32], strides = [1, 1]} : vector<2x128xf32> to vector<2x32xf32>
    %83 = vector.extract_strided_slice %80 {offsets = [0, 32], sizes = [2, 32], strides = [1, 1]} : vector<2x128xf32> to vector<2x32xf32>
    %84 = vector.extract_strided_slice %81 {offsets = [0, 64], sizes = [2, 32], strides = [1, 1]} : vector<2x128xf32> to vector<2x32xf32>
    %85 = vector.extract_strided_slice %80 {offsets = [0, 96], sizes = [2, 32], strides = [1, 1]} : vector<2x128xf32> to vector<2x32xf32>
    %86 = arith.mulf %83, %68 : vector<2x32xf32>
    %87 = arith.mulf %82, %84 : vector<2x32xf32>
    %88 = arith.addf %86, %87 : vector<2x32xf32>
    %89 = math.tanh %88 : vector<2x32xf32>
    %90 = arith.mulf %85, %89 : vector<2x32xf32>
    %c6 = arith.constant 6 : index
    %c0_25 = arith.constant 0 : index
    %91 = vector.load %arg16[%c6, %c0_25] : memref<16x32xf32, #tpu.memory_space<vmem>>, vector<2x32xf32>
    tpu.vector_store %arg16[%c6, %c0_25], %90 {strides = array<i32>} : memref<16x32xf32, #tpu.memory_space<vmem>>, vector<2x32xf32>,
    %92 = vector.extract_strided_slice %6 {offsets = [8, 0], sizes = [2, 128], strides = [1, 1]} : vector<16x128xf32> to vector<2x128xf32>
    %93 = arith.truncf %90 : vector<2x32xf32> to vector<2x32xbf16>
    %cst_26 = arith.constant dense<0.000000e+00> : vector<2x128xf32>
    %94 = tpu.matmul %93, %7, %cst_26 {dimension_numbers = #tpu.dot_dimension_numbers<[1], [0], [0], [1], [0, 0, 1, 1], [], []>} : vector<2x32xbf16>, vector<32x128xbf16>, vector<2x128xf32> -> vector<2x128xf32>
    %95 = arith.addf %92, %94 : vector<2x128xf32>
    %96 = arith.negf %95 : vector<2x128xf32>
    %97 = math.exp %96 : vector<2x128xf32>
    %cst_27 = arith.constant 1.000000e+00 : f32
    %98 = vector.broadcast %cst_27 : f32 to vector<2x128xf32>
    %99 = arith.addf %98, %97 : vector<2x128xf32>
    %100 = arith.divf %98, %99 : vector<2x128xf32>
    %101 = math.tanh %95 : vector<2x128xf32>
    %102 = vector.extract_strided_slice %100 {offsets = [0, 0], sizes = [2, 32], strides = [1, 1]} : vector<2x128xf32> to vector<2x32xf32>
    %103 = vector.extract_strided_slice %100 {offsets = [0, 32], sizes = [2, 32], strides = [1, 1]} : vector<2x128xf32> to vector<2x32xf32>
    %104 = vector.extract_strided_slice %101 {offsets = [0, 64], sizes = [2, 32], strides = [1, 1]} : vector<2x128xf32> to vector<2x32xf32>
    %105 = vector.extract_strided_slice %100 {offsets = [0, 96], sizes = [2, 32], strides = [1, 1]} : vector<2x128xf32> to vector<2x32xf32>
    %106 = arith.mulf %103, %88 : vector<2x32xf32>
    %107 = arith.mulf %102, %104 : vector<2x32xf32>
    %108 = arith.addf %106, %107 : vector<2x32xf32>
    %109 = math.tanh %108 : vector<2x32xf32>
    %110 = arith.mulf %105, %109 : vector<2x32xf32>
    %c8 = arith.constant 8 : index
    %c0_28 = arith.constant 0 : index
    %111 = vector.load %arg16[%c8, %c0_28] : memref<16x32xf32, #tpu.memory_space<vmem>>, vector<2x32xf32>
    tpu.vector_store %arg16[%c8, %c0_28], %110 {strides = array<i32>} : memref<16x32xf32, #tpu.memory_space<vmem>>, vector<2x32xf32>,
    %112 = vector.extract_strided_slice %6 {offsets = [10, 0], sizes = [2, 128], strides = [1, 1]} : vector<16x128xf32> to vector<2x128xf32>
    %113 = arith.truncf %110 : vector<2x32xf32> to vector<2x32xbf16>
    %cst_29 = arith.constant dense<0.000000e+00> : vector<2x128xf32>
    %114 = tpu.matmul %113, %7, %cst_29 {dimension_numbers = #tpu.dot_dimension_numbers<[1], [0], [0], [1], [0, 0, 1, 1], [], []>} : vector<2x32xbf16>, vector<32x128xbf16>, vector<2x128xf32> -> vector<2x128xf32>
    %115 = arith.addf %112, %114 : vector<2x128xf32>
    %116 = arith.negf %115 : vector<2x128xf32>
    %117 = math.exp %116 : vector<2x128xf32>
    %cst_30 = arith.constant 1.000000e+00 : f32
    %118 = vector.broadcast %cst_30 : f32 to vector<2x128xf32>
    %119 = arith.addf %118, %117 : vector<2x128xf32>
    %120 = arith.divf %118, %119 : vector<2x128xf32>
    %121 = math.tanh %115 : vector<2x128xf32>
    %122 = vector.extract_strided_slice %120 {offsets = [0, 0], sizes = [2, 32], strides = [1, 1]} : vector<2x128xf32> to vector<2x32xf32>
    %123 = vector.extract_strided_slice %120 {offsets = [0, 32], sizes = [2, 32], strides = [1, 1]} : vector<2x128xf32> to vector<2x32xf32>
    %124 = vector.extract_strided_slice %121 {offsets = [0, 64], sizes = [2, 32], strides = [1, 1]} : vector<2x128xf32> to vector<2x32xf32>
    %125 = vector.extract_strided_slice %120 {offsets = [0, 96], sizes = [2, 32], strides = [1, 1]} : vector<2x128xf32> to vector<2x32xf32>
    %126 = arith.mulf %123, %108 : vector<2x32xf32>
    %127 = arith.mulf %122, %124 : vector<2x32xf32>
    %128 = arith.addf %126, %127 : vector<2x32xf32>
    %129 = math.tanh %128 : vector<2x32xf32>
    %130 = arith.mulf %125, %129 : vector<2x32xf32>
    %c10 = arith.constant 10 : index
    %c0_31 = arith.constant 0 : index
    %131 = vector.load %arg16[%c10, %c0_31] : memref<16x32xf32, #tpu.memory_space<vmem>>, vector<2x32xf32>
    tpu.vector_store %arg16[%c10, %c0_31], %130 {strides = array<i32>} : memref<16x32xf32, #tpu.memory_space<vmem>>, vector<2x32xf32>,
    %132 = vector.extract_strided_slice %6 {offsets = [12, 0], sizes = [2, 128], strides = [1, 1]} : vector<16x128xf32> to vector<2x128xf32>
    %133 = arith.truncf %130 : vector<2x32xf32> to vector<2x32xbf16>
    %cst_32 = arith.constant dense<0.000000e+00> : vector<2x128xf32>
    %134 = tpu.matmul %133, %7, %cst_32 {dimension_numbers = #tpu.dot_dimension_numbers<[1], [0], [0], [1], [0, 0, 1, 1], [], []>} : vector<2x32xbf16>, vector<32x128xbf16>, vector<2x128xf32> -> vector<2x128xf32>
    %135 = arith.addf %132, %134 : vector<2x128xf32>
    %136 = arith.negf %135 : vector<2x128xf32>
    %137 = math.exp %136 : vector<2x128xf32>
    %cst_33 = arith.constant 1.000000e+00 : f32
    %138 = vector.broadcast %cst_33 : f32 to vector<2x128xf32>
    %139 = arith.addf %138, %137 : vector<2x128xf32>
    %140 = arith.divf %138, %139 : vector<2x128xf32>
    %141 = math.tanh %135 : vector<2x128xf32>
    %142 = vector.extract_strided_slice %140 {offsets = [0, 0], sizes = [2, 32], strides = [1, 1]} : vector<2x128xf32> to vector<2x32xf32>
    %143 = vector.extract_strided_slice %140 {offsets = [0, 32], sizes = [2, 32], strides = [1, 1]} : vector<2x128xf32> to vector<2x32xf32>
    %144 = vector.extract_strided_slice %141 {offsets = [0, 64], sizes = [2, 32], strides = [1, 1]} : vector<2x128xf32> to vector<2x32xf32>
    %145 = vector.extract_strided_slice %140 {offsets = [0, 96], sizes = [2, 32], strides = [1, 1]} : vector<2x128xf32> to vector<2x32xf32>
    %146 = arith.mulf %143, %128 : vector<2x32xf32>
    %147 = arith.mulf %142, %144 : vector<2x32xf32>
    %148 = arith.addf %146, %147 : vector<2x32xf32>
    %149 = math.tanh %148 : vector<2x32xf32>
    %150 = arith.mulf %145, %149 : vector<2x32xf32>
    %c12 = arith.constant 12 : index
    %c0_34 = arith.constant 0 : index
    %151 = vector.load %arg16[%c12, %c0_34] : memref<16x32xf32, #tpu.memory_space<vmem>>, vector<2x32xf32>
    tpu.vector_store %arg16[%c12, %c0_34], %150 {strides = array<i32>} : memref<16x32xf32, #tpu.memory_space<vmem>>, vector<2x32xf32>,
    %152 = vector.extract_strided_slice %6 {offsets = [14, 0], sizes = [2, 128], strides = [1, 1]} : vector<16x128xf32> to vector<2x128xf32>
    %153 = arith.truncf %150 : vector<2x32xf32> to vector<2x32xbf16>
    %cst_35 = arith.constant dense<0.000000e+00> : vector<2x128xf32>
    %154 = tpu.matmul %153, %7, %cst_35 {dimension_numbers = #tpu.dot_dimension_numbers<[1], [0], [0], [1], [0, 0, 1, 1], [], []>} : vector<2x32xbf16>, vector<32x128xbf16>, vector<2x128xf32> -> vector<2x128xf32>
    %155 = arith.addf %152, %154 : vector<2x128xf32>
    %156 = arith.negf %155 : vector<2x128xf32>
    %157 = math.exp %156 : vector<2x128xf32>
    %cst_36 = arith.constant 1.000000e+00 : f32
    %158 = vector.broadcast %cst_36 : f32 to vector<2x128xf32>
    %159 = arith.addf %158, %157 : vector<2x128xf32>
    %160 = arith.divf %158, %159 : vector<2x128xf32>
    %161 = math.tanh %155 : vector<2x128xf32>
    %162 = vector.extract_strided_slice %160 {offsets = [0, 0], sizes = [2, 32], strides = [1, 1]} : vector<2x128xf32> to vector<2x32xf32>
    %163 = vector.extract_strided_slice %160 {offsets = [0, 32], sizes = [2, 32], strides = [1, 1]} : vector<2x128xf32> to vector<2x32xf32>
    %164 = vector.extract_strided_slice %161 {offsets = [0, 64], sizes = [2, 32], strides = [1, 1]} : vector<2x128xf32> to vector<2x32xf32>
    %165 = vector.extract_strided_slice %160 {offsets = [0, 96], sizes = [2, 32], strides = [1, 1]} : vector<2x128xf32> to vector<2x32xf32>
    %166 = arith.mulf %163, %148 : vector<2x32xf32>
    %167 = arith.mulf %162, %164 : vector<2x32xf32>
    %168 = arith.addf %166, %167 : vector<2x32xf32>
    %169 = math.tanh %168 : vector<2x32xf32>
    %170 = arith.mulf %165, %169 : vector<2x32xf32>
    %c14 = arith.constant 14 : index
    %c0_37 = arith.constant 0 : index
    %171 = vector.load %arg16[%c14, %c0_37] : memref<16x32xf32, #tpu.memory_space<vmem>>, vector<2x32xf32>
    tpu.vector_store %arg16[%c14, %c0_37], %170 {strides = array<i32>} : memref<16x32xf32, #tpu.memory_space<vmem>>, vector<2x32xf32>,
    %c0_38 = arith.constant 0 : index
    %c0_39 = arith.constant 0 : index
    %c0_40 = arith.constant 0 : index
    %172 = vector.load %arg14[%c0_38, %c0_39, %c0_40] : memref<2x2x32xf32, #tpu.memory_space<vmem>>, vector<1x2x32xf32>
    %173 = vector.shape_cast %172 : vector<1x2x32xf32> to vector<2x32xf32>
    %174 = vector.shape_cast %170 : vector<2x32xf32> to vector<1x2x32xf32>
    tpu.vector_store %arg14[%c0_38, %c0_39, %c0_40], %174 {strides = array<i32>} : memref<2x2x32xf32, #tpu.memory_space<vmem>>, vector<1x2x32xf32>,
    %c0_41 = arith.constant 0 : index
    %c0_42 = arith.constant 0 : index
    %c0_43 = arith.constant 0 : index
    %175 = vector.load %arg15[%c0_41, %c0_42, %c0_43] : memref<2x2x32xf32, #tpu.memory_space<vmem>>, vector<1x2x32xf32>
    %176 = vector.shape_cast %175 : vector<1x2x32xf32> to vector<2x32xf32>
    %177 = vector.shape_cast %168 : vector<2x32xf32> to vector<1x2x32xf32>
    tpu.vector_store %arg15[%c0_41, %c0_42, %c0_43], %177 {strides = array<i32>} : memref<2x2x32xf32, #tpu.memory_space<vmem>>, vector<1x2x32xf32>,
    %c0_44 = arith.constant 0 : index
    %c0_45 = arith.constant 0 : index
    %178 = vector.load %arg16[%c0_44, %c0_45] : memref<16x32xf32, #tpu.memory_space<vmem>>, vector<16x32xf32>
    %179 = arith.truncf %178 : vector<16x32xf32> to vector<16x32xbf16>
    %c0_46 = arith.constant 0 : index
    %c0_47 = arith.constant 0 : index
    %180 = vector.load %arg4[%c0_46, %c0_47] : memref<32x128xbf16, #tpu.memory_space<vmem>>, vector<32x128xbf16>
    %cst_48 = arith.constant dense<0.000000e+00> : vector<16x128xf32>
    %181 = tpu.matmul %179, %180, %cst_48 {dimension_numbers = #tpu.dot_dimension_numbers<[1], [0], [0], [1], [0, 0, 1, 1], [], []>} : vector<16x32xbf16>, vector<32x128xbf16>, vector<16x128xf32> -> vector<16x128xf32>
    %c0_49 = arith.constant 0 : index
    %c0_50 = arith.constant 0 : index
    %182 = vector.load %arg6[%c0_49, %c0_50] : memref<1x128xf32, #tpu.memory_space<vmem>>, vector<1x128xf32>
    %183 = vector.broadcast %182 : vector<1x128xf32> to vector<16x128xf32>
    %184 = arith.addf %181, %183 : vector<16x128xf32>
    %c0_51 = arith.constant 0 : index
    %c0_52 = arith.constant 0 : index
    %185 = vector.load %arg5[%c0_51, %c0_52] : memref<32x128xbf16, #tpu.memory_space<vmem>>, vector<32x128xbf16>
    %c1 = arith.constant 1 : index
    %c0_53 = arith.constant 0 : index
    %c0_54 = arith.constant 0 : index
    %186 = vector.load %arg7[%c1, %c0_53, %c0_54] : memref<2x2x32xf32, #tpu.memory_space<vmem>>, vector<1x2x32xf32>
    %187 = vector.shape_cast %186 : vector<1x2x32xf32> to vector<2x32xf32>
    %c1_55 = arith.constant 1 : index
    %c0_56 = arith.constant 0 : index
    %c0_57 = arith.constant 0 : index
    %188 = vector.load %arg8[%c1_55, %c0_56, %c0_57] : memref<2x2x32xf32, #tpu.memory_space<vmem>>, vector<1x2x32xf32>
    %189 = vector.shape_cast %188 : vector<1x2x32xf32> to vector<2x32xf32>
    %190 = vector.extract_strided_slice %184 {offsets = [0, 0], sizes = [2, 128], strides = [1, 1]} : vector<16x128xf32> to vector<2x128xf32>
    %191 = arith.truncf %187 : vector<2x32xf32> to vector<2x32xbf16>
    %cst_58 = arith.constant dense<0.000000e+00> : vector<2x128xf32>
    %192 = tpu.matmul %191, %185, %cst_58 {dimension_numbers = #tpu.dot_dimension_numbers<[1], [0], [0], [1], [0, 0, 1, 1], [], []>} : vector<2x32xbf16>, vector<32x128xbf16>, vector<2x128xf32> -> vector<2x128xf32>
    %193 = arith.addf %190, %192 : vector<2x128xf32>
    %194 = arith.negf %193 : vector<2x128xf32>
    %195 = math.exp %194 : vector<2x128xf32>
    %cst_59 = arith.constant 1.000000e+00 : f32
    %196 = vector.broadcast %cst_59 : f32 to vector<2x128xf32>
    %197 = arith.addf %196, %195 : vector<2x128xf32>
    %198 = arith.divf %196, %197 : vector<2x128xf32>
    %199 = math.tanh %193 : vector<2x128xf32>
    %200 = vector.extract_strided_slice %198 {offsets = [0, 0], sizes = [2, 32], strides = [1, 1]} : vector<2x128xf32> to vector<2x32xf32>
    %201 = vector.extract_strided_slice %198 {offsets = [0, 32], sizes = [2, 32], strides = [1, 1]} : vector<2x128xf32> to vector<2x32xf32>
    %202 = vector.extract_strided_slice %199 {offsets = [0, 64], sizes = [2, 32], strides = [1, 1]} : vector<2x128xf32> to vector<2x32xf32>
    %203 = vector.extract_strided_slice %198 {offsets = [0, 96], sizes = [2, 32], strides = [1, 1]} : vector<2x128xf32> to vector<2x32xf32>
    %204 = arith.mulf %201, %189 : vector<2x32xf32>
    %205 = arith.mulf %200, %202 : vector<2x32xf32>
    %206 = arith.addf %204, %205 : vector<2x32xf32>
    %207 = math.tanh %206 : vector<2x32xf32>
    %208 = arith.mulf %203, %207 : vector<2x32xf32>
    %c0_60 = arith.constant 0 : index
    %c0_61 = arith.constant 0 : index
    %209 = vector.load %arg16[%c0_60, %c0_61] : memref<16x32xf32, #tpu.memory_space<vmem>>, vector<2x32xf32>
    tpu.vector_store %arg16[%c0_60, %c0_61], %208 {strides = array<i32>} : memref<16x32xf32, #tpu.memory_space<vmem>>, vector<2x32xf32>,
    %210 = vector.extract_strided_slice %184 {offsets = [2, 0], sizes = [2, 128], strides = [1, 1]} : vector<16x128xf32> to vector<2x128xf32>
    %211 = arith.truncf %208 : vector<2x32xf32> to vector<2x32xbf16>
    %cst_62 = arith.constant dense<0.000000e+00> : vector<2x128xf32>
    %212 = tpu.matmul %211, %185, %cst_62 {dimension_numbers = #tpu.dot_dimension_numbers<[1], [0], [0], [1], [0, 0, 1, 1], [], []>} : vector<2x32xbf16>, vector<32x128xbf16>, vector<2x128xf32> -> vector<2x128xf32>
    %213 = arith.addf %210, %212 : vector<2x128xf32>
    %214 = arith.negf %213 : vector<2x128xf32>
    %215 = math.exp %214 : vector<2x128xf32>
    %cst_63 = arith.constant 1.000000e+00 : f32
    %216 = vector.broadcast %cst_63 : f32 to vector<2x128xf32>
    %217 = arith.addf %216, %215 : vector<2x128xf32>
    %218 = arith.divf %216, %217 : vector<2x128xf32>
    %219 = math.tanh %213 : vector<2x128xf32>
    %220 = vector.extract_strided_slice %218 {offsets = [0, 0], sizes = [2, 32], strides = [1, 1]} : vector<2x128xf32> to vector<2x32xf32>
    %221 = vector.extract_strided_slice %218 {offsets = [0, 32], sizes = [2, 32], strides = [1, 1]} : vector<2x128xf32> to vector<2x32xf32>
    %222 = vector.extract_strided_slice %219 {offsets = [0, 64], sizes = [2, 32], strides = [1, 1]} : vector<2x128xf32> to vector<2x32xf32>
    %223 = vector.extract_strided_slice %218 {offsets = [0, 96], sizes = [2, 32], strides = [1, 1]} : vector<2x128xf32> to vector<2x32xf32>
    %224 = arith.mulf %221, %206 : vector<2x32xf32>
    %225 = arith.mulf %220, %222 : vector<2x32xf32>
    %226 = arith.addf %224, %225 : vector<2x32xf32>
    %227 = math.tanh %226 : vector<2x32xf32>
    %228 = arith.mulf %223, %227 : vector<2x32xf32>
    %c2_64 = arith.constant 2 : index
    %c0_65 = arith.constant 0 : index
    %229 = vector.load %arg16[%c2_64, %c0_65] : memref<16x32xf32, #tpu.memory_space<vmem>>, vector<2x32xf32>
    tpu.vector_store %arg16[%c2_64, %c0_65], %228 {strides = array<i32>} : memref<16x32xf32, #tpu.memory_space<vmem>>, vector<2x32xf32>,
    %230 = vector.extract_strided_slice %184 {offsets = [4, 0], sizes = [2, 128], strides = [1, 1]} : vector<16x128xf32> to vector<2x128xf32>
    %231 = arith.truncf %228 : vector<2x32xf32> to vector<2x32xbf16>
    %cst_66 = arith.constant dense<0.000000e+00> : vector<2x128xf32>
    %232 = tpu.matmul %231, %185, %cst_66 {dimension_numbers = #tpu.dot_dimension_numbers<[1], [0], [0], [1], [0, 0, 1, 1], [], []>} : vector<2x32xbf16>, vector<32x128xbf16>, vector<2x128xf32> -> vector<2x128xf32>
    %233 = arith.addf %230, %232 : vector<2x128xf32>
    %234 = arith.negf %233 : vector<2x128xf32>
    %235 = math.exp %234 : vector<2x128xf32>
    %cst_67 = arith.constant 1.000000e+00 : f32
    %236 = vector.broadcast %cst_67 : f32 to vector<2x128xf32>
    %237 = arith.addf %236, %235 : vector<2x128xf32>
    %238 = arith.divf %236, %237 : vector<2x128xf32>
    %239 = math.tanh %233 : vector<2x128xf32>
    %240 = vector.extract_strided_slice %238 {offsets = [0, 0], sizes = [2, 32], strides = [1, 1]} : vector<2x128xf32> to vector<2x32xf32>
    %241 = vector.extract_strided_slice %238 {offsets = [0, 32], sizes = [2, 32], strides = [1, 1]} : vector<2x128xf32> to vector<2x32xf32>
    %242 = vector.extract_strided_slice %239 {offsets = [0, 64], sizes = [2, 32], strides = [1, 1]} : vector<2x128xf32> to vector<2x32xf32>
    %243 = vector.extract_strided_slice %238 {offsets = [0, 96], sizes = [2, 32], strides = [1, 1]} : vector<2x128xf32> to vector<2x32xf32>
    %244 = arith.mulf %241, %226 : vector<2x32xf32>
    %245 = arith.mulf %240, %242 : vector<2x32xf32>
    %246 = arith.addf %244, %245 : vector<2x32xf32>
    %247 = math.tanh %246 : vector<2x32xf32>
    %248 = arith.mulf %243, %247 : vector<2x32xf32>
    %c4_68 = arith.constant 4 : index
    %c0_69 = arith.constant 0 : index
    %249 = vector.load %arg16[%c4_68, %c0_69] : memref<16x32xf32, #tpu.memory_space<vmem>>, vector<2x32xf32>
    tpu.vector_store %arg16[%c4_68, %c0_69], %248 {strides = array<i32>} : memref<16x32xf32, #tpu.memory_space<vmem>>, vector<2x32xf32>,
    %250 = vector.extract_strided_slice %184 {offsets = [6, 0], sizes = [2, 128], strides = [1, 1]} : vector<16x128xf32> to vector<2x128xf32>
    %251 = arith.truncf %248 : vector<2x32xf32> to vector<2x32xbf16>
    %cst_70 = arith.constant dense<0.000000e+00> : vector<2x128xf32>
    %252 = tpu.matmul %251, %185, %cst_70 {dimension_numbers = #tpu.dot_dimension_numbers<[1], [0], [0], [1], [0, 0, 1, 1], [], []>} : vector<2x32xbf16>, vector<32x128xbf16>, vector<2x128xf32> -> vector<2x128xf32>
    %253 = arith.addf %250, %252 : vector<2x128xf32>
    %254 = arith.negf %253 : vector<2x128xf32>
    %255 = math.exp %254 : vector<2x128xf32>
    %cst_71 = arith.constant 1.000000e+00 : f32
    %256 = vector.broadcast %cst_71 : f32 to vector<2x128xf32>
    %257 = arith.addf %256, %255 : vector<2x128xf32>
    %258 = arith.divf %256, %257 : vector<2x128xf32>
    %259 = math.tanh %253 : vector<2x128xf32>
    %260 = vector.extract_strided_slice %258 {offsets = [0, 0], sizes = [2, 32], strides = [1, 1]} : vector<2x128xf32> to vector<2x32xf32>
    %261 = vector.extract_strided_slice %258 {offsets = [0, 32], sizes = [2, 32], strides = [1, 1]} : vector<2x128xf32> to vector<2x32xf32>
    %262 = vector.extract_strided_slice %259 {offsets = [0, 64], sizes = [2, 32], strides = [1, 1]} : vector<2x128xf32> to vector<2x32xf32>
    %263 = vector.extract_strided_slice %258 {offsets = [0, 96], sizes = [2, 32], strides = [1, 1]} : vector<2x128xf32> to vector<2x32xf32>
    %264 = arith.mulf %261, %246 : vector<2x32xf32>
    %265 = arith.mulf %260, %262 : vector<2x32xf32>
    %266 = arith.addf %264, %265 : vector<2x32xf32>
    %267 = math.tanh %266 : vector<2x32xf32>
    %268 = arith.mulf %263, %267 : vector<2x32xf32>
    %c6_72 = arith.constant 6 : index
    %c0_73 = arith.constant 0 : index
    %269 = vector.load %arg16[%c6_72, %c0_73] : memref<16x32xf32, #tpu.memory_space<vmem>>, vector<2x32xf32>
    tpu.vector_store %arg16[%c6_72, %c0_73], %268 {strides = array<i32>} : memref<16x32xf32, #tpu.memory_space<vmem>>, vector<2x32xf32>,
    %270 = vector.extract_strided_slice %184 {offsets = [8, 0], sizes = [2, 128], strides = [1, 1]} : vector<16x128xf32> to vector<2x128xf32>
    %271 = arith.truncf %268 : vector<2x32xf32> to vector<2x32xbf16>
    %cst_74 = arith.constant dense<0.000000e+00> : vector<2x128xf32>
    %272 = tpu.matmul %271, %185, %cst_74 {dimension_numbers = #tpu.dot_dimension_numbers<[1], [0], [0], [1], [0, 0, 1, 1], [], []>} : vector<2x32xbf16>, vector<32x128xbf16>, vector<2x128xf32> -> vector<2x128xf32>
    %273 = arith.addf %270, %272 : vector<2x128xf32>
    %274 = arith.negf %273 : vector<2x128xf32>
    %275 = math.exp %274 : vector<2x128xf32>
    %cst_75 = arith.constant 1.000000e+00 : f32
    %276 = vector.broadcast %cst_75 : f32 to vector<2x128xf32>
    %277 = arith.addf %276, %275 : vector<2x128xf32>
    %278 = arith.divf %276, %277 : vector<2x128xf32>
    %279 = math.tanh %273 : vector<2x128xf32>
    %280 = vector.extract_strided_slice %278 {offsets = [0, 0], sizes = [2, 32], strides = [1, 1]} : vector<2x128xf32> to vector<2x32xf32>
    %281 = vector.extract_strided_slice %278 {offsets = [0, 32], sizes = [2, 32], strides = [1, 1]} : vector<2x128xf32> to vector<2x32xf32>
    %282 = vector.extract_strided_slice %279 {offsets = [0, 64], sizes = [2, 32], strides = [1, 1]} : vector<2x128xf32> to vector<2x32xf32>
    %283 = vector.extract_strided_slice %278 {offsets = [0, 96], sizes = [2, 32], strides = [1, 1]} : vector<2x128xf32> to vector<2x32xf32>
    %284 = arith.mulf %281, %266 : vector<2x32xf32>
    %285 = arith.mulf %280, %282 : vector<2x32xf32>
    %286 = arith.addf %284, %285 : vector<2x32xf32>
    %287 = math.tanh %286 : vector<2x32xf32>
    %288 = arith.mulf %283, %287 : vector<2x32xf32>
    %c8_76 = arith.constant 8 : index
    %c0_77 = arith.constant 0 : index
    %289 = vector.load %arg16[%c8_76, %c0_77] : memref<16x32xf32, #tpu.memory_space<vmem>>, vector<2x32xf32>
    tpu.vector_store %arg16[%c8_76, %c0_77], %288 {strides = array<i32>} : memref<16x32xf32, #tpu.memory_space<vmem>>, vector<2x32xf32>,
    %290 = vector.extract_strided_slice %184 {offsets = [10, 0], sizes = [2, 128], strides = [1, 1]} : vector<16x128xf32> to vector<2x128xf32>
    %291 = arith.truncf %288 : vector<2x32xf32> to vector<2x32xbf16>
    %cst_78 = arith.constant dense<0.000000e+00> : vector<2x128xf32>
    %292 = tpu.matmul %291, %185, %cst_78 {dimension_numbers = #tpu.dot_dimension_numbers<[1], [0], [0], [1], [0, 0, 1, 1], [], []>} : vector<2x32xbf16>, vector<32x128xbf16>, vector<2x128xf32> -> vector<2x128xf32>
    %293 = arith.addf %290, %292 : vector<2x128xf32>
    %294 = arith.negf %293 : vector<2x128xf32>
    %295 = math.exp %294 : vector<2x128xf32>
    %cst_79 = arith.constant 1.000000e+00 : f32
    %296 = vector.broadcast %cst_79 : f32 to vector<2x128xf32>
    %297 = arith.addf %296, %295 : vector<2x128xf32>
    %298 = arith.divf %296, %297 : vector<2x128xf32>
    %299 = math.tanh %293 : vector<2x128xf32>
    %300 = vector.extract_strided_slice %298 {offsets = [0, 0], sizes = [2, 32], strides = [1, 1]} : vector<2x128xf32> to vector<2x32xf32>
    %301 = vector.extract_strided_slice %298 {offsets = [0, 32], sizes = [2, 32], strides = [1, 1]} : vector<2x128xf32> to vector<2x32xf32>
    %302 = vector.extract_strided_slice %299 {offsets = [0, 64], sizes = [2, 32], strides = [1, 1]} : vector<2x128xf32> to vector<2x32xf32>
    %303 = vector.extract_strided_slice %298 {offsets = [0, 96], sizes = [2, 32], strides = [1, 1]} : vector<2x128xf32> to vector<2x32xf32>
    %304 = arith.mulf %301, %286 : vector<2x32xf32>
    %305 = arith.mulf %300, %302 : vector<2x32xf32>
    %306 = arith.addf %304, %305 : vector<2x32xf32>
    %307 = math.tanh %306 : vector<2x32xf32>
    %308 = arith.mulf %303, %307 : vector<2x32xf32>
    %c10_80 = arith.constant 10 : index
    %c0_81 = arith.constant 0 : index
    %309 = vector.load %arg16[%c10_80, %c0_81] : memref<16x32xf32, #tpu.memory_space<vmem>>, vector<2x32xf32>
    tpu.vector_store %arg16[%c10_80, %c0_81], %308 {strides = array<i32>} : memref<16x32xf32, #tpu.memory_space<vmem>>, vector<2x32xf32>,
    %310 = vector.extract_strided_slice %184 {offsets = [12, 0], sizes = [2, 128], strides = [1, 1]} : vector<16x128xf32> to vector<2x128xf32>
    %311 = arith.truncf %308 : vector<2x32xf32> to vector<2x32xbf16>
    %cst_82 = arith.constant dense<0.000000e+00> : vector<2x128xf32>
    %312 = tpu.matmul %311, %185, %cst_82 {dimension_numbers = #tpu.dot_dimension_numbers<[1], [0], [0], [1], [0, 0, 1, 1], [], []>} : vector<2x32xbf16>, vector<32x128xbf16>, vector<2x128xf32> -> vector<2x128xf32>
    %313 = arith.addf %310, %312 : vector<2x128xf32>
    %314 = arith.negf %313 : vector<2x128xf32>
    %315 = math.exp %314 : vector<2x128xf32>
    %cst_83 = arith.constant 1.000000e+00 : f32
    %316 = vector.broadcast %cst_83 : f32 to vector<2x128xf32>
    %317 = arith.addf %316, %315 : vector<2x128xf32>
    %318 = arith.divf %316, %317 : vector<2x128xf32>
    %319 = math.tanh %313 : vector<2x128xf32>
    %320 = vector.extract_strided_slice %318 {offsets = [0, 0], sizes = [2, 32], strides = [1, 1]} : vector<2x128xf32> to vector<2x32xf32>
    %321 = vector.extract_strided_slice %318 {offsets = [0, 32], sizes = [2, 32], strides = [1, 1]} : vector<2x128xf32> to vector<2x32xf32>
    %322 = vector.extract_strided_slice %319 {offsets = [0, 64], sizes = [2, 32], strides = [1, 1]} : vector<2x128xf32> to vector<2x32xf32>
    %323 = vector.extract_strided_slice %318 {offsets = [0, 96], sizes = [2, 32], strides = [1, 1]} : vector<2x128xf32> to vector<2x32xf32>
    %324 = arith.mulf %321, %306 : vector<2x32xf32>
    %325 = arith.mulf %320, %322 : vector<2x32xf32>
    %326 = arith.addf %324, %325 : vector<2x32xf32>
    %327 = math.tanh %326 : vector<2x32xf32>
    %328 = arith.mulf %323, %327 : vector<2x32xf32>
    %c12_84 = arith.constant 12 : index
    %c0_85 = arith.constant 0 : index
    %329 = vector.load %arg16[%c12_84, %c0_85] : memref<16x32xf32, #tpu.memory_space<vmem>>, vector<2x32xf32>
    tpu.vector_store %arg16[%c12_84, %c0_85], %328 {strides = array<i32>} : memref<16x32xf32, #tpu.memory_space<vmem>>, vector<2x32xf32>,
    %330 = vector.extract_strided_slice %184 {offsets = [14, 0], sizes = [2, 128], strides = [1, 1]} : vector<16x128xf32> to vector<2x128xf32>
    %331 = arith.truncf %328 : vector<2x32xf32> to vector<2x32xbf16>
    %cst_86 = arith.constant dense<0.000000e+00> : vector<2x128xf32>
    %332 = tpu.matmul %331, %185, %cst_86 {dimension_numbers = #tpu.dot_dimension_numbers<[1], [0], [0], [1], [0, 0, 1, 1], [], []>} : vector<2x32xbf16>, vector<32x128xbf16>, vector<2x128xf32> -> vector<2x128xf32>
    %333 = arith.addf %330, %332 : vector<2x128xf32>
    %334 = arith.negf %333 : vector<2x128xf32>
    %335 = math.exp %334 : vector<2x128xf32>
    %cst_87 = arith.constant 1.000000e+00 : f32
    %336 = vector.broadcast %cst_87 : f32 to vector<2x128xf32>
    %337 = arith.addf %336, %335 : vector<2x128xf32>
    %338 = arith.divf %336, %337 : vector<2x128xf32>
    %339 = math.tanh %333 : vector<2x128xf32>
    %340 = vector.extract_strided_slice %338 {offsets = [0, 0], sizes = [2, 32], strides = [1, 1]} : vector<2x128xf32> to vector<2x32xf32>
    %341 = vector.extract_strided_slice %338 {offsets = [0, 32], sizes = [2, 32], strides = [1, 1]} : vector<2x128xf32> to vector<2x32xf32>
    %342 = vector.extract_strided_slice %339 {offsets = [0, 64], sizes = [2, 32], strides = [1, 1]} : vector<2x128xf32> to vector<2x32xf32>
    %343 = vector.extract_strided_slice %338 {offsets = [0, 96], sizes = [2, 32], strides = [1, 1]} : vector<2x128xf32> to vector<2x32xf32>
    %344 = arith.mulf %341, %326 : vector<2x32xf32>
    %345 = arith.mulf %340, %342 : vector<2x32xf32>
    %346 = arith.addf %344, %345 : vector<2x32xf32>
    %347 = math.tanh %346 : vector<2x32xf32>
    %348 = arith.mulf %343, %347 : vector<2x32xf32>
    %c14_88 = arith.constant 14 : index
    %c0_89 = arith.constant 0 : index
    %349 = vector.load %arg16[%c14_88, %c0_89] : memref<16x32xf32, #tpu.memory_space<vmem>>, vector<2x32xf32>
    tpu.vector_store %arg16[%c14_88, %c0_89], %348 {strides = array<i32>} : memref<16x32xf32, #tpu.memory_space<vmem>>, vector<2x32xf32>,
    %c1_90 = arith.constant 1 : index
    %c0_91 = arith.constant 0 : index
    %c0_92 = arith.constant 0 : index
    %350 = vector.load %arg14[%c1_90, %c0_91, %c0_92] : memref<2x2x32xf32, #tpu.memory_space<vmem>>, vector<1x2x32xf32>
    %351 = vector.shape_cast %350 : vector<1x2x32xf32> to vector<2x32xf32>
    %352 = vector.shape_cast %348 : vector<2x32xf32> to vector<1x2x32xf32>
    tpu.vector_store %arg14[%c1_90, %c0_91, %c0_92], %352 {strides = array<i32>} : memref<2x2x32xf32, #tpu.memory_space<vmem>>, vector<1x2x32xf32>,
    %c1_93 = arith.constant 1 : index
    %c0_94 = arith.constant 0 : index
    %c0_95 = arith.constant 0 : index
    %353 = vector.load %arg15[%c1_93, %c0_94, %c0_95] : memref<2x2x32xf32, #tpu.memory_space<vmem>>, vector<1x2x32xf32>
    %354 = vector.shape_cast %353 : vector<1x2x32xf32> to vector<2x32xf32>
    %355 = vector.shape_cast %346 : vector<2x32xf32> to vector<1x2x32xf32>
    tpu.vector_store %arg15[%c1_93, %c0_94, %c0_95], %355 {strides = array<i32>} : memref<2x2x32xf32, #tpu.memory_space<vmem>>, vector<1x2x32xf32>,
    %c0_96 = arith.constant 0 : index
    %c0_97 = arith.constant 0 : index
    %356 = vector.load %arg16[%c0_96, %c0_97] : memref<16x32xf32, #tpu.memory_space<vmem>>, vector<16x32xf32>
    %357 = arith.truncf %356 : vector<16x32xf32> to vector<16x32xbf16>
    %c0_98 = arith.constant 0 : index
    %c0_99 = arith.constant 0 : index
    %358 = vector.load %arg9[%c0_98, %c0_99] : memref<32x256xbf16, #tpu.memory_space<vmem>>, vector<32x256xbf16>
    %cst_100 = arith.constant dense<0.000000e+00> : vector<16x256xf32>
    %359 = tpu.matmul %357, %358, %cst_100 {dimension_numbers = #tpu.dot_dimension_numbers<[1], [0], [0], [1], [0, 0, 1, 1], [], []>} : vector<16x32xbf16>, vector<32x256xbf16>, vector<16x256xf32> -> vector<16x256xf32>
    %c0_101 = arith.constant 0 : index
    %c0_102 = arith.constant 0 : index
    %360 = vector.load %arg10[%c0_101, %c0_102] : memref<1x256xf32, #tpu.memory_space<vmem>>, vector<1x256xf32>
    %361 = vector.broadcast %360 : vector<1x256xf32> to vector<16x256xf32>
    %362 = arith.addf %359, %361 : vector<16x256xf32>
    %cst_103 = arith.constant 0.000000e+00 : f32
    %363 = vector.broadcast %cst_103 : f32 to vector<16x256xf32>
    %364 = arith.cmpf ogt, %362, %363 : vector<16x256xf32>
    %cst_104 = arith.constant 1.000000e-01 : f32
    %365 = vector.broadcast %cst_104 : f32 to vector<16x256xf32>
    %366 = arith.mulf %365, %362 : vector<16x256xf32>
    %367 = arith.select %364, %362, %366 : vector<16x256xi1>, vector<16x256xf32>
    %368 = arith.truncf %367 : vector<16x256xf32> to vector<16x256xbf16>
    %c0_105 = arith.constant 0 : index
    %c0_106 = arith.constant 0 : index
    %369 = vector.load %arg11[%c0_105, %c0_106] : memref<256x128xbf16, #tpu.memory_space<vmem>>, vector<256x128xbf16>
    %cst_107 = arith.constant dense<0.000000e+00> : vector<16x128xf32>
    %370 = tpu.matmul %368, %369, %cst_107 {dimension_numbers = #tpu.dot_dimension_numbers<[1], [0], [0], [1], [0, 0, 1, 1], [], []>} : vector<16x256xbf16>, vector<256x128xbf16>, vector<16x128xf32> -> vector<16x128xf32>
    %c0_108 = arith.constant 0 : index
    %c0_109 = arith.constant 0 : index
    %371 = vector.load %arg12[%c0_108, %c0_109] : memref<1x128xf32, #tpu.memory_space<vmem>>, vector<1x128xf32>
    %372 = vector.broadcast %371 : vector<1x128xf32> to vector<16x128xf32>
    %373 = arith.addf %370, %372 : vector<16x128xf32>
    %c0_110 = arith.constant 0 : index
    %c0_111 = arith.constant 0 : index
    %374 = vector.load %arg13[%c0_110, %c0_111] : memref<16x128xf32, #tpu.memory_space<vmem>>, vector<16x128xf32>
    tpu.vector_store %arg13[%c0_110, %c0_111], %373 {strides = array<i32>} : memref<16x128xf32, #tpu.memory_space<vmem>>, vector<16x128xf32>,
    return
  }
}

</mosaic_0001>

<llo_original>
// kernel: _lambda_.1
$region0: #{_lambda_.1}
  #allocation0 [shape = 'u32[]', space=smem, size = 0x4, offset = 0x4, fixed_abs, tag = 'smem constant byte address 0x4 - core index']
  #allocation1 [shape = 'u32[144,128]{1,0:T(1,128)}', space=vmem, size = 0x12000, scoped, tag = 'internal scratch']
  #allocation2 [shape = 'f32[16,32]{1,0:T(8,128)}', space=vmem, size = 0x2000, scoped, tag = 'scratch operand']
  %s0 = inlined_call_operand.vmem [shape: f32[16,128], index: 0, kind: input, shape index: {}]
  %s1 = inlined_call_operand.hbm [shape: bf16[128,128], index: 1, kind: input, shape index: {}]
  %s2 = inlined_call_operand.hbm [shape: bf16[32,128], index: 2, kind: input, shape index: {}]
  %s3 = inlined_call_operand.hbm [shape: f32[1,128], index: 3, kind: input, shape index: {}]
  %s4 = inlined_call_operand.hbm [shape: bf16[32,128], index: 4, kind: input, shape index: {}]
  %s5 = inlined_call_operand.vmem [shape: bf16[32,128], index: 5, kind: input, shape index: {}]
  %s6 = inlined_call_operand.hbm [shape: f32[1,128], index: 6, kind: input, shape index: {}]
  %s7 = inlined_call_operand.vmem [shape: f32[2,2,32], index: 7, kind: input, shape index: {}, may-alias: {7,8}]
  %s8 = inlined_call_operand.vmem [shape: f32[2,2,32], index: 8, kind: input, shape index: {}, may-alias: {7,8}]
  %s9 = inlined_call_operand.vmem [shape: bf16[32,256], index: 9, kind: input, shape index: {}]
  %s10 = inlined_call_operand.hbm [shape: f32[1,256], index: 10, kind: input, shape index: {}]
  %s11 = inlined_call_operand.vmem [shape: bf16[256,128], index: 11, kind: input, shape index: {}]
  %s12 = inlined_call_operand.vmem [shape: f32[1,128], index: 12, kind: input, shape index: {}]
  %s13 = inlined_call_operand.vmem [shape: f32[16,128], index: 13, kind: output, shape index: {0}]
  %s14 = inlined_call_operand.vmem [shape: f32[2,2,32], index: 14, kind: output, shape index: {1}]
  %s15 = inlined_call_operand.vmem [shape: f32[2,2,32], index: 15, kind: output, shape index: {2}]
  %16 = xla_tuple %s13, %s14, %s15
  %s17 = sld [smem:[#allocation0]]
  $region102: #{_lambda_.1} parent=0
    _
  %s19 = ssub.s32 1, %s17
  %s20 = scalar_select 0, %s19, %s17
  $region1: #{_lambda_.1} parent=0
    #allocation3 [shape = 'u8[32768]{0}', space=vmem, size = 0x8000, scoped, tag = 'input window, operand 1, single buffered']
    #allocation4 [shape = 's32[1]{0}', space=sflag, size = 0x4, scoped, tag = 'scoped memory for _lambda_.1']
    #allocation5 [shape = 'u8[8192]{0}', space=vmem, size = 0x2000, scoped, tag = 'input window, operand 2, single buffered']
    #allocation6 [shape = 's32[1]{0}', space=sflag, size = 0x4, scoped, tag = 'scoped memory for _lambda_.1']
    #allocation7 [shape = 'u8[512]{0}', space=vmem, size = 0x400, scoped, tag = 'input window, operand 3, single buffered']
    #allocation8 [shape = 'u8[8192]{0}', space=vmem, size = 0x2000, scoped, tag = 'input window, operand 4, single buffered']
    #allocation9 [shape = 's32[1]{0}', space=sflag, size = 0x4, scoped, tag = 'scoped memory for _lambda_.1']
    #allocation10 [shape = 'u8[512]{0}', space=vmem, size = 0x400, scoped, tag = 'input window, operand 6, single buffered']
    #allocation11 [shape = 'u8[1024]{0}', space=vmem, size = 0x400, scoped, tag = 'input window, operand 10, single buffered']
    #allocation12 [shape = 's32[1]{0}', space=sflag, size = 0x4, scoped, tag = 'scoped memory for _lambda_.1']
    %21 = vsyncpa [#allocation4], 0
    %22 = vsyncpa [#allocation6], 0
    %23 = vsyncpa [#allocation9], 0
    %24 = vsyncpa [#allocation12], 0
    // Predicated region
    $region2: #{_lambda_.1} parent=1 // pred_check
      _
    $region3: #{_lambda_.1} parent=1 // pred_check_branch
      %26 = sbr.rel (0) target = $region5
    $region4: #{_lambda_.1} parent=1 // pred_region
      _
    $region5: #{_lambda_.1} parent=1 // pred_fallthru
      _
    // Predicated region
    $region6: #{_lambda_.1} parent=1 // pred_check
      _
    $region7: #{_lambda_.1} parent=1 // pred_check_branch
      %28 = sbr.rel (0) target = $region9
    $region8: #{_lambda_.1} parent=1 // pred_region
      %s30 = ssub.s32 1024, 1024
      %31 = vsyncadd [#allocation4], %s30
      %s32 = sshll.u32 [#allocation3], 4
      %s33 = int_to_ptr.vmem [resolvable:$true] %s32
      %38 = dma.hbm_to_vmem [thread:$0]  %s1, 1024, %s33, [#allocation4], 64, 64, 4
    $region9: #{_lambda_.1} parent=1 // pred_fallthru
      _
    // Predicated region
    $region10: #{_lambda_.1} parent=1 // pred_check
      _
    $region11: #{_lambda_.1} parent=1 // pred_check_branch
      %40 = sbr.rel (0) target = $region13
    $region12: #{_lambda_.1} parent=1 // pred_region
      %s42 = ssub.s32 256, 256
      %43 = vsyncadd [#allocation6], %s42
      %s44 = sshll.u32 [#allocation5], 4
      %s45 = int_to_ptr.vmem [resolvable:$true] %s44
      %50 = dma.hbm_to_vmem [thread:$0]  %s2, 256, %s45, [#allocation6], 64, 64, 4
    $region13: #{_lambda_.1} parent=1 // pred_fallthru
      _
    // Predicated region
    $region14: #{_lambda_.1} parent=1 // pred_check
      _
    $region15: #{_lambda_.1} parent=1 // pred_check_branch
      %52 = sbr.rel (0) target = $region17
    $region16: #{_lambda_.1} parent=1 // pred_region
      %s54 = ssub.s32 16, 16
      %55 = vsyncadd [#allocation6], %s54
      %s57 = sshll.u32 [#allocation7], 4
      %s58 = int_to_ptr.vmem [resolvable:$true] %s57
      %60 = dma.hbm_to_vmem [thread:$0]  %s3, 16, %s58, [#allocation6]
    $region17: #{_lambda_.1} parent=1 // pred_fallthru
      _
    // Predicated region
    $region18: #{_lambda_.1} parent=1 // pred_check
      _
    $region19: #{_lambda_.1} parent=1 // pred_check_branch
      %62 = sbr.rel (0) target = $region21
    $region20: #{_lambda_.1} parent=1 // pred_region
      %s64 = ssub.s32 256, 256
      %65 = vsyncadd [#allocation9], %s64
      %s66 = sshll.u32 [#allocation8], 4
      %s67 = int_to_ptr.vmem [resolvable:$true] %s66
      %72 = dma.hbm_to_vmem [thread:$0]  %s4, 256, %s67, [#allocation9], 64, 64, 4
    $region21: #{_lambda_.1} parent=1 // pred_fallthru
      _
    // Predicated region
    $region22: #{_lambda_.1} parent=1 // pred_check
      _
    $region23: #{_lambda_.1} parent=1 // pred_check_branch
      %74 = sbr.rel (0) target = $region25
    $region24: #{_lambda_.1} parent=1 // pred_region
      _
    $region25: #{_lambda_.1} parent=1 // pred_fallthru
      _
    // Predicated region
    $region26: #{_lambda_.1} parent=1 // pred_check
      _
    $region27: #{_lambda_.1} parent=1 // pred_check_branch
      %76 = sbr.rel (0) target = $region29
    $region28: #{_lambda_.1} parent=1 // pred_region
      %s78 = ssub.s32 16, 16
      %79 = vsyncadd [#allocation9], %s78
      %s81 = sshll.u32 [#allocation10], 4
      %s82 = int_to_ptr.vmem [resolvable:$true] %s81
      %84 = dma.hbm_to_vmem [thread:$0]  %s6, 16, %s82, [#allocation9]
    $region29: #{_lambda_.1} parent=1 // pred_fallthru
      _
    // Predicated region
    $region30: #{_lambda_.1} parent=1 // pred_check
      _
    $region31: #{_lambda_.1} parent=1 // pred_check_branch
      %86 = sbr.rel (0) target = $region33
    $region32: #{_lambda_.1} parent=1 // pred_region
      _
    $region33: #{_lambda_.1} parent=1 // pred_fallthru
      _
    // Predicated region
    $region34: #{_lambda_.1} parent=1 // pred_check
      _
    $region35: #{_lambda_.1} parent=1 // pred_check_branch
      %88 = sbr.rel (0) target = $region37
    $region36: #{_lambda_.1} parent=1 // pred_region
      _
    $region37: #{_lambda_.1} parent=1 // pred_fallthru
      _
    // Predicated region
    $region38: #{_lambda_.1} parent=1 // pred_check
      _
    $region39: #{_lambda_.1} parent=1 // pred_check_branch
      %90 = sbr.rel (0) target = $region41
    $region40: #{_lambda_.1} parent=1 // pred_region
      _
    $region41: #{_lambda_.1} parent=1 // pred_fallthru
      _
    // Predicated region
    $region42: #{_lambda_.1} parent=1 // pred_check
      _
    $region43: #{_lambda_.1} parent=1 // pred_check_branch
      %92 = sbr.rel (0) target = $region45
    $region44: #{_lambda_.1} parent=1 // pred_region
      %s94 = ssub.s32 32, 32
      %95 = vsyncadd [#allocation12], %s94
      %s97 = sshll.u32 [#allocation11], 4
      %s98 = int_to_ptr.vmem [resolvable:$true] %s97
      %100 = dma.hbm_to_vmem [thread:$0]  %s10, 32, %s98, [#allocation12]
    $region45: #{_lambda_.1} parent=1 // pred_fallthru
      _
    // Predicated region
    $region46: #{_lambda_.1} parent=1 // pred_check
      _
    $region47: #{_lambda_.1} parent=1 // pred_check_branch
      %102 = sbr.rel (0) target = $region49
    $region48: #{_lambda_.1} parent=1 // pred_region
      _
    $region49: #{_lambda_.1} parent=1 // pred_fallthru
      _
    // Predicated region
    $region50: #{_lambda_.1} parent=1 // pred_check
      _
    $region51: #{_lambda_.1} parent=1 // pred_check_branch
      %104 = sbr.rel (0) target = $region53
    $region52: #{_lambda_.1} parent=1 // pred_region
      _
    $region53: #{_lambda_.1} parent=1 // pred_fallthru
      _
    // Predicated region
    $region54: #{_lambda_.1} parent=1 // pred_check
      _
    $region55: #{_lambda_.1} parent=1 // pred_check_branch
      %106 = sbr.rel (0) target = $region57
    $region56: #{_lambda_.1} parent=1 // pred_region
      %107 = dma.done [#allocation4], 1024
    $region57: #{_lambda_.1} parent=1 // pred_fallthru
      _
    // Predicated region
    $region58: #{_lambda_.1} parent=1 // pred_check
      _
    $region59: #{_lambda_.1} parent=1 // pred_check_branch
      %109 = sbr.rel (0) target = $region61
    $region60: #{_lambda_.1} parent=1 // pred_region
      %110 = dma.done [#allocation6], 256
    $region61: #{_lambda_.1} parent=1 // pred_fallthru
      _
    // Predicated region
    $region62: #{_lambda_.1} parent=1 // pred_check
      _
    $region63: #{_lambda_.1} parent=1 // pred_check_branch
      %112 = sbr.rel (0) target = $region65
    $region64: #{_lambda_.1} parent=1 // pred_region
      %113 = dma.done [#allocation6], 16
    $region65: #{_lambda_.1} parent=1 // pred_fallthru
      _
    // Predicated region
    $region66: #{_lambda_.1} parent=1 // pred_check
      _
    $region67: #{_lambda_.1} parent=1 // pred_check_branch
      %115 = sbr.rel (0) target = $region69
    $region68: #{_lambda_.1} parent=1 // pred_region
      %116 = dma.done [#allocation9], 256
    $region69: #{_lambda_.1} parent=1 // pred_fallthru
      _
    // Predicated region
    $region70: #{_lambda_.1} parent=1 // pred_check
      _
    $region71: #{_lambda_.1} parent=1 // pred_check_branch
      %118 = sbr.rel (0) target = $region73
    $region72: #{_lambda_.1} parent=1 // pred_region
      %119 = dma.done [#allocation9], 16
    $region73: #{_lambda_.1} parent=1 // pred_fallthru
      _
    // Predicated region
    $region74: #{_lambda_.1} parent=1 // pred_check
      _
    $region75: #{_lambda_.1} parent=1 // pred_check_branch
      %121 = sbr.rel (0) target = $region77
    $region76: #{_lambda_.1} parent=1 // pred_region
      %122 = dma.done [#allocation12], 32
    $region77: #{_lambda_.1} parent=1 // pred_fallthru
      _
    %v124 = vld [vmem:[%s0] sm:$0xff]
    %v125 = vld [vmem:[%s0 + $0x8] sm:$0xff]
    %v126 = vpack.c.bf16 %v125, %v124
    %v127 = vld [vmem:[#allocation3] sm:$0xf]
    %v128 = vld [vmem:[#allocation3 + $0x4] sm:$0xf]
    %v129 = vld [vmem:[#allocation3 + $0x8] sm:$0xf]
    %v130 = vld [vmem:[#allocation3 + $0xc] sm:$0xf]
    %v131 = vld [vmem:[#allocation3 + $0x10] sm:$0xf]
    %v132 = vld [vmem:[#allocation3 + $0x14] sm:$0xf]
    %v133 = vld [vmem:[#allocation3 + $0x18] sm:$0xf]
    %v134 = vld [vmem:[#allocation3 + $0x1c] sm:$0xf]
    %v135 = vld [vmem:[#allocation3 + $0x20] sm:$0xf]
    %v136 = vld [vmem:[#allocation3 + $0x24] sm:$0xf]
    %v137 = vld [vmem:[#allocation3 + $0x28] sm:$0xf]
    %v138 = vld [vmem:[#allocation3 + $0x2c] sm:$0xf]
    %v139 = vld [vmem:[#allocation3 + $0x30] sm:$0xf]
    %v140 = vld [vmem:[#allocation3 + $0x34] sm:$0xf]
    %v141 = vld [vmem:[#allocation3 + $0x38] sm:$0xf]
    %v142 = vld [vmem:[#allocation3 + $0x3c] sm:$0xf]
    %v143 = vld [vmem:[#allocation7] sm:$0x1]
    %v145 = vlaneseq
    %v146 = vshrl.u32 %v145, 7
    %v147 = vsub.s32 0, %v146
    %v148 = vrot.slane %v143, %v147
    %v166 = vunpack.c.l.b16 %v127
    %v167 = vunpack.c.l.b16 %v128
    %v168 = vunpack.c.l.b16 %v129
    %v169 = vunpack.c.l.b16 %v130
    %v170 = vunpack.c.l.b16 %v131
    %v171 = vunpack.c.l.b16 %v132
    %v172 = vunpack.c.l.b16 %v133
    %v173 = vunpack.c.l.b16 %v134
    %v174 = vunpack.c.l.b16 %v135
    %v175 = vunpack.c.l.b16 %v136
    %v176 = vunpack.c.l.b16 %v137
    %v177 = vunpack.c.l.b16 %v138
    %v178 = vunpack.c.l.b16 %v139
    %v179 = vunpack.c.l.b16 %v140
    %v180 = vunpack.c.l.b16 %v141
    %v181 = vunpack.c.l.b16 %v142
    %v182 = vpack.c.b16 %v167, %v166
    %v183 = vpack.c.b16 %v169, %v168
    %v184 = vpack.c.b16 %v171, %v170
    %v185 = vpack.c.b16 %v173, %v172
    %v186 = vpack.c.b16 %v175, %v174
    %v187 = vpack.c.b16 %v177, %v176
    %v188 = vpack.c.b16 %v179, %v178
    %v189 = vpack.c.b16 %v181, %v180
    %198 = vmatprep.subr.bf16.mxu0 0
    %199 = vmatpush1.bf16.msra.mxu0 %v189
    %200 = vmatprep.subr.bf16.mxu0 0
    %201 = vmatpush1.bf16.msra.mxu0 %v188
    %202 = vmatprep.subr.bf16.mxu0 0
    %203 = vmatpush1.bf16.msra.mxu0 %v187
    %204 = vmatprep.subr.bf16.mxu0 0
    %205 = vmatpush1.bf16.msra.mxu0 %v186
    %206 = vmatprep.subr.bf16.mxu0 0
    %207 = vmatpush1.bf16.msra.mxu0 %v185
    %208 = vmatprep.subr.bf16.mxu0 0
    %209 = vmatpush1.bf16.msra.mxu0 %v184
    %210 = vmatprep.subr.bf16.mxu0 0
    %211 = vmatpush1.bf16.msra.mxu0 %v183
    %212 = vmatprep.subr.bf16.mxu0 0
    %213 = vmatpush1.bf16.msra.mxu0 %v182
    %214 = vmatprep.subr.bf16.mxu0 0
    %215 = vmatpush2.bf16.msra.mxu0 0
    %216 = vmatprep.subr.bf16.mxu0 0
    %217 = vmatpush2.bf16.msra.mxu0 0
    %218 = vmatprep.subr.bf16.mxu0 0
    %219 = vmatpush2.bf16.msra.mxu0 0
    %220 = vmatprep.subr.bf16.mxu0 0
    %221 = vmatpush2.bf16.msra.mxu0 0
    %222 = vmatprep.subr.bf16.mxu0 0
    %223 = vmatpush2.bf16.msra.mxu0 0
    %224 = vmatprep.subr.bf16.mxu0 0
    %225 = vmatpush2.bf16.msra.mxu0 0
    %226 = vmatprep.subr.bf16.mxu0 0
    %227 = vmatpush2.bf16.msra.mxu0 0
    %228 = vmatprep.subr.bf16.mxu0 0
    %229 = vmatpush2.bf16.msra.mxu0 0
    %230 = vmatprep.mubr.bf16.mxu0 0
    %231 = vmatmul.mubr.bf16.gmra.mxu0 %v126
    %v232 = vpop.f32.mrf.mxu0
    %v233 = vadd.f32 %v148, %v232
    %v234 = vpop.f32.mrf.mxu0
    %v235 = vpop.f32.mrf.mxu0
    %v236 = vadd.f32 %v148, %v235
    %v237 = vpop.f32.mrf.mxu0
    %238 = vdwg.mxu0
    %v239 = vld [vmem:[#allocation5] sm:$0xf]
    %v240 = vld [vmem:[#allocation5 + $0x4] sm:$0xf]
    %v241 = vld [vmem:[#allocation5 + $0x8] sm:$0xf]
    %v242 = vld [vmem:[#allocation5 + $0xc] sm:$0xf]
    %v243 = vld [vmem:[%s7] sm:$0x3]
    %v244 = vld [vmem:[%s8] sm:$0x3]
    %v245 = vpack.c.bf16 %v243, %v243
    %v250 = vunpack.c.l.b16 %v239
    %v251 = vunpack.c.l.b16 %v240
    %v252 = vunpack.c.l.b16 %v241
    %v253 = vunpack.c.l.b16 %v242
    %v254 = vpack.c.b16 %v251, %v250
    %v255 = vpack.c.b16 %v253, %v252
    %vm258 = vcmask 261120
    %v260 = vsel %vm258, %v245, 0
    %262 = vmatprep.subr.bf16.mxu0 0
    %263 = vmatpush1.bf16.msra.mxu0 0
    %264 = vmatprep.subr.bf16.mxu0 0
    %265 = vmatpush1.bf16.msra.mxu0 0
    %266 = vmatprep.subr.bf16.mxu0 0
    %267 = vmatpush1.bf16.msra.mxu0 0
    %268 = vmatprep.subr.bf16.mxu0 0
    %269 = vmatpush1.bf16.msra.mxu0 0
    %270 = vmatprep.subr.bf16.mxu0 0
    %271 = vmatpush1.bf16.msra.mxu0 0
    %272 = vmatprep.subr.bf16.mxu0 0
    %273 = vmatpush1.bf16.msra.mxu0 0
    %274 = vmatprep.subr.bf16.mxu0 0
    %275 = vmatpush1.bf16.msra.mxu0 %v255
    %276 = vmatprep.subr.bf16.mxu0 0
    %277 = vmatpush1.bf16.msra.mxu0 %v254
    %278 = vmatprep.subr.bf16.mxu0 0
    %279 = vmatpush2.bf16.msra.mxu0 0
    %280 = vmatprep.subr.bf16.mxu0 0
    %281 = vmatpush2.bf16.msra.mxu0 0
    %282 = vmatprep.subr.bf16.mxu0 0
    %283 = vmatpush2.bf16.msra.mxu0 0
    %284 = vmatprep.subr.bf16.mxu0 0
    %285 = vmatpush2.bf16.msra.mxu0 0
    %286 = vmatprep.subr.bf16.mxu0 0
    %287 = vmatpush2.bf16.msra.mxu0 0
    %288 = vmatprep.subr.bf16.mxu0 0
    %289 = vmatpush2.bf16.msra.mxu0 0
    %290 = vmatprep.subr.bf16.mxu0 0
    %291 = vmatpush2.bf16.msra.mxu0 0
    %292 = vmatprep.subr.bf16.mxu0 0
    %293 = vmatpush2.bf16.msra.mxu0 0
    %294 = vmatprep.mubr.bf16.mxu0 0
    %295 = vmatmul.mubr.bf16.gmra.mxu0 %v260
    %v296 = vpop.f32.mrf.mxu0
    %v297 = vadd.f32 0.0, %v296
    %v298 = vpop.f32.mrf.mxu0
    %v299 = vpop.f32.mrf.mxu0
    %v300 = vpop.f32.mrf.mxu0
    %301 = vdwg.mxu0
    %v302 = vadd.f32 %v233, %v297
    %v303 = vxor.u32 %v302, 2147483648
    %v304 = vmul.f32 %v303, 1.442695
    %v305 = vpow.pop %v304
    %v306 = vadd.f32 %v305, 1.0
    %v307 = vrcp.pop %v306
    %v308 = vmul.f32 1.0, %v307
    %v309 = vtanh.pop %v302
    %311 = vrot.lane.b32.xlu0 %v244, 32
    %v312 = vpop.permute.xlu0 %311
    %v314 = vmul.f32 %v308, %v312
    %316 = vrot.lane.b32.xlu0 %v309, 64
    %v317 = vpop.permute.xlu0 %316
    %v319 = vmul.f32 %v308, %v317
    %321 = vrot.lane.b32.xlu0 %v319, 32
    %v322 = vpop.permute.xlu0 %321
    %v324 = vadd.f32 %v314, %v322
    %v325 = vtanh.pop %v324
    %327 = vrot.lane.b32.xlu0 %v325, 64
    %v328 = vpop.permute.xlu0 %327
    %v330 = vmul.f32 %v308, %v328
    %332 = vrot.lane.b32.xlu0 %v330, 32
    %v333 = vpop.permute.xlu0 %332
    %vm335 = vcmask 254976
    %336 = vst.msk [vmem:[#allocation2] sm:$0x3] %vm335, %v333
    %v337 = vpack.c.bf16 %v330, %v330
    %339 = vrot.lane.b32.xlu0 %v337, 32
    %v340 = vpop.permute.xlu0 %339
    %v342 = vsel %vm258, %v340, 0
    %344 = vmatprep.subr.bf16.mxu0 0
    %345 = vmatpush1.bf16.msra.mxu0 0
    %346 = vmatprep.subr.bf16.mxu0 0
    %347 = vmatpush1.bf16.msra.mxu0 0
    %348 = vmatprep.subr.bf16.mxu0 0
    %349 = vmatpush1.bf16.msra.mxu0 0
    %350 = vmatprep.subr.bf16.mxu0 0
    %351 = vmatpush1.bf16.msra.mxu0 0
    %352 = vmatprep.subr.bf16.mxu0 0
    %353 = vmatpush1.bf16.msra.mxu0 0
    %354 = vmatprep.subr.bf16.mxu0 0
    %355 = vmatpush1.bf16.msra.mxu0 0
    %356 = vmatprep.subr.bf16.mxu0 0
    %357 = vmatpush1.bf16.msra.mxu0 %v255
    %358 = vmatprep.subr.bf16.mxu0 0
    %359 = vmatpush1.bf16.msra.mxu0 %v254
    %360 = vmatprep.subr.bf16.mxu0 0
    %361 = vmatpush2.bf16.msra.mxu0 0
    %362 = vmatprep.subr.bf16.mxu0 0
    %363 = vmatpush2.bf16.msra.mxu0 0
    %364 = vmatprep.subr.bf16.mxu0 0
    %365 = vmatpush2.bf16.msra.mxu0 0
    %366 = vmatprep.subr.bf16.mxu0 0
    %367 = vmatpush2.bf16.msra.mxu0 0
    %368 = vmatprep.subr.bf16.mxu0 0
    %369 = vmatpush2.bf16.msra.mxu0 0
    %370 = vmatprep.subr.bf16.mxu0 0
    %371 = vmatpush2.bf16.msra.mxu0 0
    %372 = vmatprep.subr.bf16.mxu0 0
    %373 = vmatpush2.bf16.msra.mxu0 0
    %374 = vmatprep.subr.bf16.mxu0 0
    %375 = vmatpush2.bf16.msra.mxu0 0
    %376 = vmatprep.mubr.bf16.mxu0 0
    %377 = vmatmul.mubr.bf16.gmra.mxu0 %v342
    %v378 = vpop.f32.mrf.mxu0
    %v379 = vadd.f32 0.0, %v378
    %v380 = vpop.f32.mrf.mxu0
    %v381 = vpop.f32.mrf.mxu0
    %v382 = vpop.f32.mrf.mxu0
    %383 = vdwg.mxu0
    %v385 = vrot.slane %v379, 6
    %v387 = vadd.f32 %v233, %v385
    %v388 = vxor.u32 %v387, 2147483648
    %v389 = vmul.f32 %v388, 1.442695
    %v390 = vpow.pop %v389
    %v391 = vadd.f32 %v390, 1.0
    %v392 = vrcp.pop %v391
    %v393 = vmul.f32 1.0, %v392
    %v394 = vtanh.pop %v387
    %v396 = vrot.slane %v324, 6
    %v398 = vmul.f32 %v393, %v396
    %400 = vrot.lane.b32.xlu0 %v394, 64
    %v401 = vpop.permute.xlu0 %400
    %v403 = vmul.f32 %v393, %v401
    %405 = vrot.lane.b32.xlu0 %v403, 32
    %v406 = vpop.permute.xlu0 %405
    %v408 = vadd.f32 %v398, %v406
    %v409 = vtanh.pop %v408
    %411 = vrot.lane.b32.xlu0 %v409, 64
    %v412 = vpop.permute.xlu0 %411
    %v414 = vmul.f32 %v393, %v412
    %416 = vrot.lane.b32.xlu0 %v414, 32
    %v417 = vpop.permute.xlu0 %416
    %vm419 = vcmask 257026
    %420 = vst.msk [vmem:[#allocation2] sm:$0xc] %vm419, %v417
    %v421 = vpack.c.bf16 %v414, %v414
    %v423 = vrot.slane %v421, 1
    %424 = vrot.lane.b32.xlu0 %v423, 32
    %v425 = vpop.permute.xlu0 %424
    %v427 = vsel %vm258, %v425, 0
    %429 = vmatprep.subr.bf16.mxu0 0
    %430 = vmatpush1.bf16.msra.mxu0 0
    %431 = vmatprep.subr.bf16.mxu0 0
    %432 = vmatpush1.bf16.msra.mxu0 0
    %433 = vmatprep.subr.bf16.mxu0 0
    %434 = vmatpush1.bf16.msra.mxu0 0
    %435 = vmatprep.subr.bf16.mxu0 0
    %436 = vmatpush1.bf16.msra.mxu0 0
    %437 = vmatprep.subr.bf16.mxu0 0
    %438 = vmatpush1.bf16.msra.mxu0 0
    %439 = vmatprep.subr.bf16.mxu0 0
    %440 = vmatpush1.bf16.msra.mxu0 0
    %441 = vmatprep.subr.bf16.mxu0 0
    %442 = vmatpush1.bf16.msra.mxu0 %v255
    %443 = vmatprep.subr.bf16.mxu0 0
    %444 = vmatpush1.bf16.msra.mxu0 %v254
    %445 = vmatprep.subr.bf16.mxu0 0
    %446 = vmatpush2.bf16.msra.mxu0 0
    %447 = vmatprep.subr.bf16.mxu0 0
    %448 = vmatpush2.bf16.msra.mxu0 0
    %449 = vmatprep.subr.bf16.mxu0 0
    %450 = vmatpush2.bf16.msra.mxu0 0
    %451 = vmatprep.subr.bf16.mxu0 0
    %452 = vmatpush2.bf16.msra.mxu0 0
    %453 = vmatprep.subr.bf16.mxu0 0
    %454 = vmatpush2.bf16.msra.mxu0 0
    %455 = vmatprep.subr.bf16.mxu0 0
    %456 = vmatpush2.bf16.msra.mxu0 0
    %457 = vmatprep.subr.bf16.mxu0 0
    %458 = vmatpush2.bf16.msra.mxu0 0
    %459 = vmatprep.subr.bf16.mxu0 0
    %460 = vmatpush2.bf16.msra.mxu0 0
    %461 = vmatprep.mubr.bf16.mxu0 0
    %462 = vmatmul.mubr.bf16.gmra.mxu0 %v427
    %v463 = vpop.f32.mrf.mxu0
    %v464 = vadd.f32 0.0, %v463
    %v465 = vpop.f32.mrf.mxu0
    %v466 = vpop.f32.mrf.mxu0
    %v467 = vpop.f32.mrf.mxu0
    %468 = vdwg.mxu0
    %v470 = vrot.slane %v464, 4
    %v472 = vadd.f32 %v233, %v470
    %v473 = vxor.u32 %v472, 2147483648
    %v474 = vmul.f32 %v473, 1.442695
    %v475 = vpow.pop %v474
    %v476 = vadd.f32 %v475, 1.0
    %v477 = vrcp.pop %v476
    %v478 = vmul.f32 1.0, %v477
    %v479 = vtanh.pop %v472
    %v481 = vrot.slane %v408, 6
    %v483 = vmul.f32 %v478, %v481
    %485 = vrot.lane.b32.xlu0 %v479, 64
    %v486 = vpop.permute.xlu0 %485
    %v488 = vmul.f32 %v478, %v486
    %490 = vrot.lane.b32.xlu0 %v488, 32
    %v491 = vpop.permute.xlu0 %490
    %v493 = vadd.f32 %v483, %v491
    %v494 = vtanh.pop %v493
    %496 = vrot.lane.b32.xlu0 %v494, 64
    %v497 = vpop.permute.xlu0 %496
    %v499 = vmul.f32 %v478, %v497
    %501 = vrot.lane.b32.xlu0 %v499, 32
    %v502 = vpop.permute.xlu0 %501
    %vm504 = vcmask 259076
    %505 = vst.msk [vmem:[#allocation2] sm:$0x30] %vm504, %v502
    %v506 = vpack.c.bf16 %v499, %v499
    %v508 = vrot.slane %v506, 2
    %509 = vrot.lane.b32.xlu0 %v508, 32
    %v510 = vpop.permute.xlu0 %509
    %v512 = vsel %vm258, %v510, 0
    %514 = vmatprep.subr.bf16.mxu0 0
    %515 = vmatpush1.bf16.msra.mxu0 0
    %516 = vmatprep.subr.bf16.mxu0 0
    %517 = vmatpush1.bf16.msra.mxu0 0
    %518 = vmatprep.subr.bf16.mxu0 0
    %519 = vmatpush1.bf16.msra.mxu0 0
    %520 = vmatprep.subr.bf16.mxu0 0
    %521 = vmatpush1.bf16.msra.mxu0 0
    %522 = vmatprep.subr.bf16.mxu0 0
    %523 = vmatpush1.bf16.msra.mxu0 0
    %524 = vmatprep.subr.bf16.mxu0 0
    %525 = vmatpush1.bf16.msra.mxu0 0
    %526 = vmatprep.subr.bf16.mxu0 0
    %527 = vmatpush1.bf16.msra.mxu0 %v255
    %528 = vmatprep.subr.bf16.mxu0 0
    %529 = vmatpush1.bf16.msra.mxu0 %v254
    %530 = vmatprep.subr.bf16.mxu0 0
    %531 = vmatpush2.bf16.msra.mxu0 0
    %532 = vmatprep.subr.bf16.mxu0 0
    %533 = vmatpush2.bf16.msra.mxu0 0
    %534 = vmatprep.subr.bf16.mxu0 0
    %535 = vmatpush2.bf16.msra.mxu0 0
    %536 = vmatprep.subr.bf16.mxu0 0
    %537 = vmatpush2.bf16.msra.mxu0 0
    %538 = vmatprep.subr.bf16.mxu0 0
    %539 = vmatpush2.bf16.msra.mxu0 0
    %540 = vmatprep.subr.bf16.mxu0 0
    %541 = vmatpush2.bf16.msra.mxu0 0
    %542 = vmatprep.subr.bf16.mxu0 0
    %543 = vmatpush2.bf16.msra.mxu0 0
    %544 = vmatprep.subr.bf16.mxu0 0
    %545 = vmatpush2.bf16.msra.mxu0 0
    %546 = vmatprep.mubr.bf16.mxu0 0
    %547 = vmatmul.mubr.bf16.gmra.mxu0 %v512
    %v548 = vpop.f32.mrf.mxu0
    %v549 = vadd.f32 0.0, %v548
    %v550 = vpop.f32.mrf.mxu0
    %v551 = vpop.f32.mrf.mxu0
    %v552 = vpop.f32.mrf.mxu0
    %553 = vdwg.mxu0
    %v555 = vrot.slane %v549, 2
    %v557 = vadd.f32 %v233, %v555
    %v558 = vxor.u32 %v557, 2147483648
    %v559 = vmul.f32 %v558, 1.442695
    %v560 = vpow.pop %v559
    %v561 = vadd.f32 %v560, 1.0
    %v562 = vrcp.pop %v561
    %v563 = vmul.f32 1.0, %v562
    %v564 = vtanh.pop %v557
    %v566 = vrot.slane %v493, 6
    %v568 = vmul.f32 %v563, %v566
    %570 = vrot.lane.b32.xlu0 %v564, 64
    %v571 = vpop.permute.xlu0 %570
    %v573 = vmul.f32 %v563, %v571
    %575 = vrot.lane.b32.xlu0 %v573, 32
    %v576 = vpop.permute.xlu0 %575
    %v578 = vadd.f32 %v568, %v576
    %v579 = vtanh.pop %v578
    %581 = vrot.lane.b32.xlu0 %v579, 64
    %v582 = vpop.permute.xlu0 %581
    %v584 = vmul.f32 %v563, %v582
    %586 = vrot.lane.b32.xlu0 %v584, 32
    %v587 = vpop.permute.xlu0 %586
    %vm589 = vcmask 261126
    %590 = vst.msk [vmem:[#allocation2] sm:$0xc0] %vm589, %v587
    %v591 = vpack.c.bf16 %v584, %v584
    %v593 = vrot.slane %v591, 3
    %594 = vrot.lane.b32.xlu0 %v593, 32
    %v595 = vpop.permute.xlu0 %594
    %v597 = vsel %vm258, %v595, 0
    %599 = vmatprep.subr.bf16.mxu0 0
    %600 = vmatpush1.bf16.msra.mxu0 0
    %601 = vmatprep.subr.bf16.mxu0 0
    %602 = vmatpush1.bf16.msra.mxu0 0
    %603 = vmatprep.subr.bf16.mxu0 0
    %604 = vmatpush1.bf16.msra.mxu0 0
    %605 = vmatprep.subr.bf16.mxu0 0
    %606 = vmatpush1.bf16.msra.mxu0 0
    %607 = vmatprep.subr.bf16.mxu0 0
    %608 = vmatpush1.bf16.msra.mxu0 0
    %609 = vmatprep.subr.bf16.mxu0 0
    %610 = vmatpush1.bf16.msra.mxu0 0
    %611 = vmatprep.subr.bf16.mxu0 0
    %612 = vmatpush1.bf16.msra.mxu0 %v255
    %613 = vmatprep.subr.bf16.mxu0 0
    %614 = vmatpush1.bf16.msra.mxu0 %v254
    %615 = vmatprep.subr.bf16.mxu0 0
    %616 = vmatpush2.bf16.msra.mxu0 0
    %617 = vmatprep.subr.bf16.mxu0 0
    %618 = vmatpush2.bf16.msra.mxu0 0
    %619 = vmatprep.subr.bf16.mxu0 0
    %620 = vmatpush2.bf16.msra.mxu0 0
    %621 = vmatprep.subr.bf16.mxu0 0
    %622 = vmatpush2.bf16.msra.mxu0 0
    %623 = vmatprep.subr.bf16.mxu0 0
    %624 = vmatpush2.bf16.msra.mxu0 0
    %625 = vmatprep.subr.bf16.mxu0 0
    %626 = vmatpush2.bf16.msra.mxu0 0
    %627 = vmatprep.subr.bf16.mxu0 0
    %628 = vmatpush2.bf16.msra.mxu0 0
    %629 = vmatprep.subr.bf16.mxu0 0
    %630 = vmatpush2.bf16.msra.mxu0 0
    %631 = vmatprep.mubr.bf16.mxu0 0
    %632 = vmatmul.mubr.bf16.gmra.mxu0 %v597
    %v633 = vpop.f32.mrf.mxu0
    %v634 = vadd.f32 0.0, %v633
    %v635 = vpop.f32.mrf.mxu0
    %v636 = vpop.f32.mrf.mxu0
    %v637 = vpop.f32.mrf.mxu0
    %638 = vdwg.mxu0
    %v639 = vadd.f32 %v236, %v634
    %v640 = vxor.u32 %v639, 2147483648
    %v641 = vmul.f32 %v640, 1.442695
    %v642 = vpow.pop %v641
    %v643 = vadd.f32 %v642, 1.0
    %v644 = vrcp.pop %v643
    %v645 = vmul.f32 1.0, %v644
    %v646 = vtanh.pop %v639
    %v648 = vrot.slane %v578, 6
    %v650 = vmul.f32 %v645, %v648
    %652 = vrot.lane.b32.xlu0 %v646, 64
    %v653 = vpop.permute.xlu0 %652
    %v655 = vmul.f32 %v645, %v653
    %657 = vrot.lane.b32.xlu0 %v655, 32
    %v658 = vpop.permute.xlu0 %657
    %v660 = vadd.f32 %v650, %v658
    %v661 = vtanh.pop %v660
    %663 = vrot.lane.b32.xlu0 %v661, 64
    %v664 = vpop.permute.xlu0 %663
    %v666 = vmul.f32 %v645, %v664
    %668 = vrot.lane.b32.xlu0 %v666, 32
    %v669 = vpop.permute.xlu0 %668
    %671 = vst.msk [vmem:[#allocation2 + $0x8] sm:$0x3] %vm335, %v669
    %v672 = vpack.c.bf16 %v666, %v666
    %674 = vrot.lane.b32.xlu0 %v672, 32
    %v675 = vpop.permute.xlu0 %674
    %v677 = vsel %vm258, %v675, 0
    %679 = vmatprep.subr.bf16.mxu0 0
    %680 = vmatpush1.bf16.msra.mxu0 0
    %681 = vmatprep.subr.bf16.mxu0 0
    %682 = vmatpush1.bf16.msra.mxu0 0
    %683 = vmatprep.subr.bf16.mxu0 0
    %684 = vmatpush1.bf16.msra.mxu0 0
    %685 = vmatprep.subr.bf16.mxu0 0
    %686 = vmatpush1.bf16.msra.mxu0 0
    %687 = vmatprep.subr.bf16.mxu0 0
    %688 = vmatpush1.bf16.msra.mxu0 0
    %689 = vmatprep.subr.bf16.mxu0 0
    %690 = vmatpush1.bf16.msra.mxu0 0
    %691 = vmatprep.subr.bf16.mxu0 0
    %692 = vmatpush1.bf16.msra.mxu0 %v255
    %693 = vmatprep.subr.bf16.mxu0 0
    %694 = vmatpush1.bf16.msra.mxu0 %v254
    %695 = vmatprep.subr.bf16.mxu0 0
    %696 = vmatpush2.bf16.msra.mxu0 0
    %697 = vmatprep.subr.bf16.mxu0 0
    %698 = vmatpush2.bf16.msra.mxu0 0
    %699 = vmatprep.subr.bf16.mxu0 0
    %700 = vmatpush2.bf16.msra.mxu0 0
    %701 = vmatprep.subr.bf16.mxu0 0
    %702 = vmatpush2.bf16.msra.mxu0 0
    %703 = vmatprep.subr.bf16.mxu0 0
    %704 = vmatpush2.bf16.msra.mxu0 0
    %705 = vmatprep.subr.bf16.mxu0 0
    %706 = vmatpush2.bf16.msra.mxu0 0
    %707 = vmatprep.subr.bf16.mxu0 0
    %708 = vmatpush2.bf16.msra.mxu0 0
    %709 = vmatprep.subr.bf16.mxu0 0
    %710 = vmatpush2.bf16.msra.mxu0 0
    %711 = vmatprep.mubr.bf16.mxu0 0
    %712 = vmatmul.mubr.bf16.gmra.mxu0 %v677
    %v713 = vpop.f32.mrf.mxu0
    %v714 = vadd.f32 0.0, %v713
    %v715 = vpop.f32.mrf.mxu0
    %v716 = vpop.f32.mrf.mxu0
    %v717 = vpop.f32.mrf.mxu0
    %718 = vdwg.mxu0
    %v720 = vrot.slane %v714, 6
    %v722 = vadd.f32 %v236, %v720
    %v723 = vxor.u32 %v722, 2147483648
    %v724 = vmul.f32 %v723, 1.442695
    %v725 = vpow.pop %v724
    %v726 = vadd.f32 %v725, 1.0
    %v727 = vrcp.pop %v726
    %v728 = vmul.f32 1.0, %v727
    %v729 = vtanh.pop %v722
    %v731 = vrot.slane %v660, 6
    %v733 = vmul.f32 %v728, %v731
    %735 = vrot.lane.b32.xlu0 %v729, 64
    %v736 = vpop.permute.xlu0 %735
    %v738 = vmul.f32 %v728, %v736
    %740 = vrot.lane.b32.xlu0 %v738, 32
    %v741 = vpop.permute.xlu0 %740
    %v743 = vadd.f32 %v733, %v741
    %v744 = vtanh.pop %v743
    %746 = vrot.lane.b32.xlu0 %v744, 64
    %v747 = vpop.permute.xlu0 %746
    %v749 = vmul.f32 %v728, %v747
    %751 = vrot.lane.b32.xlu0 %v749, 32
    %v752 = vpop.permute.xlu0 %751
    %754 = vst.msk [vmem:[#allocation2 + $0x8] sm:$0xc] %vm419, %v752
    %v755 = vpack.c.bf16 %v749, %v749
    %v757 = vrot.slane %v755, 1
    %758 = vrot.lane.b32.xlu0 %v757, 32
    %v759 = vpop.permute.xlu0 %758
    %v761 = vsel %vm258, %v759, 0
    %763 = vmatprep.subr.bf16.mxu0 0
    %764 = vmatpush1.bf16.msra.mxu0 0
    %765 = vmatprep.subr.bf16.mxu0 0
    %766 = vmatpush1.bf16.msra.mxu0 0
    %767 = vmatprep.subr.bf16.mxu0 0
    %768 = vmatpush1.bf16.msra.mxu0 0
    %769 = vmatprep.subr.bf16.mxu0 0
    %770 = vmatpush1.bf16.msra.mxu0 0
    %771 = vmatprep.subr.bf16.mxu0 0
    %772 = vmatpush1.bf16.msra.mxu0 0
    %773 = vmatprep.subr.bf16.mxu0 0
    %774 = vmatpush1.bf16.msra.mxu0 0
    %775 = vmatprep.subr.bf16.mxu0 0
    %776 = vmatpush1.bf16.msra.mxu0 %v255
    %777 = vmatprep.subr.bf16.mxu0 0
    %778 = vmatpush1.bf16.msra.mxu0 %v254
    %779 = vmatprep.subr.bf16.mxu0 0
    %780 = vmatpush2.bf16.msra.mxu0 0
    %781 = vmatprep.subr.bf16.mxu0 0
    %782 = vmatpush2.bf16.msra.mxu0 0
    %783 = vmatprep.subr.bf16.mxu0 0
    %784 = vmatpush2.bf16.msra.mxu0 0
    %785 = vmatprep.subr.bf16.mxu0 0
    %786 = vmatpush2.bf16.msra.mxu0 0
    %787 = vmatprep.subr.bf16.mxu0 0
    %788 = vmatpush2.bf16.msra.mxu0 0
    %789 = vmatprep.subr.bf16.mxu0 0
    %790 = vmatpush2.bf16.msra.mxu0 0
    %791 = vmatprep.subr.bf16.mxu0 0
    %792 = vmatpush2.bf16.msra.mxu0 0
    %793 = vmatprep.subr.bf16.mxu0 0
    %794 = vmatpush2.bf16.msra.mxu0 0
    %795 = vmatprep.mubr.bf16.mxu0 0
    %796 = vmatmul.mubr.bf16.gmra.mxu0 %v761
    %v797 = vpop.f32.mrf.mxu0
    %v798 = vadd.f32 0.0, %v797
    %v799 = vpop.f32.mrf.mxu0
    %v800 = vpop.f32.mrf.mxu0
    %v801 = vpop.f32.mrf.mxu0
    %802 = vdwg.mxu0
    %v804 = vrot.slane %v798, 4
    %v806 = vadd.f32 %v236, %v804
    %v807 = vxor.u32 %v806, 2147483648
    %v808 = vmul.f32 %v807, 1.442695
    %v809 = vpow.pop %v808
    %v810 = vadd.f32 %v809, 1.0
    %v811 = vrcp.pop %v810
    %v812 = vmul.f32 1.0, %v811
    %v813 = vtanh.pop %v806
    %v815 = vrot.slane %v743, 6
    %v817 = vmul.f32 %v812, %v815
    %819 = vrot.lane.b32.xlu0 %v813, 64
    %v820 = vpop.permute.xlu0 %819
    %v822 = vmul.f32 %v812, %v820
    %824 = vrot.lane.b32.xlu0 %v822, 32
    %v825 = vpop.permute.xlu0 %824
    %v827 = vadd.f32 %v817, %v825
    %v828 = vtanh.pop %v827
    %830 = vrot.lane.b32.xlu0 %v828, 64
    %v831 = vpop.permute.xlu0 %830
    %v833 = vmul.f32 %v812, %v831
    %835 = vrot.lane.b32.xlu0 %v833, 32
    %v836 = vpop.permute.xlu0 %835
    %838 = vst.msk [vmem:[#allocation2 + $0x8] sm:$0x30] %vm504, %v836
    %v839 = vpack.c.bf16 %v833, %v833
    %v841 = vrot.slane %v839, 2
    %842 = vrot.lane.b32.xlu0 %v841, 32
    %v843 = vpop.permute.xlu0 %842
    %v845 = vsel %vm258, %v843, 0
    %847 = vmatprep.subr.bf16.mxu0 0
    %848 = vmatpush1.bf16.msra.mxu0 0
    %849 = vmatprep.subr.bf16.mxu0 0
    %850 = vmatpush1.bf16.msra.mxu0 0
    %851 = vmatprep.subr.bf16.mxu0 0
    %852 = vmatpush1.bf16.msra.mxu0 0
    %853 = vmatprep.subr.bf16.mxu0 0
    %854 = vmatpush1.bf16.msra.mxu0 0
    %855 = vmatprep.subr.bf16.mxu0 0
    %856 = vmatpush1.bf16.msra.mxu0 0
    %857 = vmatprep.subr.bf16.mxu0 0
    %858 = vmatpush1.bf16.msra.mxu0 0
    %859 = vmatprep.subr.bf16.mxu0 0
    %860 = vmatpush1.bf16.msra.mxu0 %v255
    %861 = vmatprep.subr.bf16.mxu0 0
    %862 = vmatpush1.bf16.msra.mxu0 %v254
    %863 = vmatprep.subr.bf16.mxu0 0
    %864 = vmatpush2.bf16.msra.mxu0 0
    %865 = vmatprep.subr.bf16.mxu0 0
    %866 = vmatpush2.bf16.msra.mxu0 0
    %867 = vmatprep.subr.bf16.mxu0 0
    %868 = vmatpush2.bf16.msra.mxu0 0
    %869 = vmatprep.subr.bf16.mxu0 0
    %870 = vmatpush2.bf16.msra.mxu0 0
    %871 = vmatprep.subr.bf16.mxu0 0
    %872 = vmatpush2.bf16.msra.mxu0 0
    %873 = vmatprep.subr.bf16.mxu0 0
    %874 = vmatpush2.bf16.msra.mxu0 0
    %875 = vmatprep.subr.bf16.mxu0 0
    %876 = vmatpush2.bf16.msra.mxu0 0
    %877 = vmatprep.subr.bf16.mxu0 0
    %878 = vmatpush2.bf16.msra.mxu0 0
    %879 = vmatprep.mubr.bf16.mxu0 0
    %880 = vmatmul.mubr.bf16.gmra.mxu0 %v845
    %v881 = vpop.f32.mrf.mxu0
    %v882 = vadd.f32 0.0, %v881
    %v883 = vpop.f32.mrf.mxu0
    %v884 = vpop.f32.mrf.mxu0
    %v885 = vpop.f32.mrf.mxu0
    %886 = vdwg.mxu0
    %v888 = vrot.slane %v882, 2
    %v890 = vadd.f32 %v236, %v888
    %v891 = vxor.u32 %v890, 2147483648
    %v892 = vmul.f32 %v891, 1.442695
    %v893 = vpow.pop %v892
    %v894 = vadd.f32 %v893, 1.0
    %v895 = vrcp.pop %v894
    %v896 = vmul.f32 1.0, %v895
    %v897 = vtanh.pop %v890
    %v899 = vrot.slane %v827, 6
    %v901 = vmul.f32 %v896, %v899
    %903 = vrot.lane.b32.xlu0 %v897, 64
    %v904 = vpop.permute.xlu0 %903
    %v906 = vmul.f32 %v896, %v904
    %908 = vrot.lane.b32.xlu0 %v906, 32
    %v909 = vpop.permute.xlu0 %908
    %v911 = vadd.f32 %v901, %v909
    %v912 = vtanh.pop %v911
    %914 = vrot.lane.b32.xlu0 %v912, 64
    %v915 = vpop.permute.xlu0 %914
    %v917 = vmul.f32 %v896, %v915
    %919 = vrot.lane.b32.xlu0 %v917, 32
    %v920 = vpop.permute.xlu0 %919
    %922 = vst.msk [vmem:[#allocation2 + $0x8] sm:$0xc0] %vm589, %v920
    %923 = vst.msk [vmem:[%s14 - $0x6] sm:$0xc0] %vm589, %v920
    %925 = vrot.lane.b32.xlu0 %v911, 96
    %v926 = vpop.permute.xlu0 %925
    %928 = vst.msk [vmem:[%s15 - $0x6] sm:$0xc0] %vm589, %v926
    %v929 = vld [vmem:[#allocation2] sm:$0xff]
    %v930 = vld [vmem:[#allocation2 + $0x8] sm:$0xff]
    %v931 = vpack.c.bf16 %v930, %v929
    %v932 = vld [vmem:[#allocation8] sm:$0xf]
    %v933 = vld [vmem:[#allocation8 + $0x4] sm:$0xf]
    %v934 = vld [vmem:[#allocation8 + $0x8] sm:$0xf]
    %v935 = vld [vmem:[#allocation8 + $0xc] sm:$0xf]
    %v936 = vld [vmem:[#allocation10] sm:$0x1]
    %v938 = vlaneseq
    %v939 = vshrl.u32 %v938, 7
    %v940 = vsub.s32 0, %v939
    %v941 = vrot.slane %v936, %v940
    %v947 = vunpack.c.l.b16 %v932
    %v948 = vunpack.c.l.b16 %v933
    %v949 = vunpack.c.l.b16 %v934
    %v950 = vunpack.c.l.b16 %v935
    %v951 = vpack.c.b16 %v948, %v947
    %v952 = vpack.c.b16 %v950, %v949
    %v956 = vsel %vm258, %v931, 0
    %958 = vmatprep.subr.bf16.mxu0 0
    %959 = vmatpush1.bf16.msra.mxu0 0
    %960 = vmatprep.subr.bf16.mxu0 0
    %961 = vmatpush1.bf16.msra.mxu0 0
    %962 = vmatprep.subr.bf16.mxu0 0
    %963 = vmatpush1.bf16.msra.mxu0 0
    %964 = vmatprep.subr.bf16.mxu0 0
    %965 = vmatpush1.bf16.msra.mxu0 0
    %966 = vmatprep.subr.bf16.mxu0 0
    %967 = vmatpush1.bf16.msra.mxu0 0
    %968 = vmatprep.subr.bf16.mxu0 0
    %969 = vmatpush1.bf16.msra.mxu0 0
    %970 = vmatprep.subr.bf16.mxu0 0
    %971 = vmatpush1.bf16.msra.mxu0 %v952
    %972 = vmatprep.subr.bf16.mxu0 0
    %973 = vmatpush1.bf16.msra.mxu0 %v951
    %974 = vmatprep.subr.bf16.mxu0 0
    %975 = vmatpush2.bf16.msra.mxu0 0
    %976 = vmatprep.subr.bf16.mxu0 0
    %977 = vmatpush2.bf16.msra.mxu0 0
    %978 = vmatprep.subr.bf16.mxu0 0
    %979 = vmatpush2.bf16.msra.mxu0 0
    %980 = vmatprep.subr.bf16.mxu0 0
    %981 = vmatpush2.bf16.msra.mxu0 0
    %982 = vmatprep.subr.bf16.mxu0 0
    %983 = vmatpush2.bf16.msra.mxu0 0
    %984 = vmatprep.subr.bf16.mxu0 0
    %985 = vmatpush2.bf16.msra.mxu0 0
    %986 = vmatprep.subr.bf16.mxu0 0
    %987 = vmatpush2.bf16.msra.mxu0 0
    %988 = vmatprep.subr.bf16.mxu0 0
    %989 = vmatpush2.bf16.msra.mxu0 0
    %990 = vmatprep.mubr.bf16.mxu0 0
    %991 = vmatmul.mubr.bf16.gmra.mxu0 %v956
    %v992 = vpop.f32.mrf.mxu0
    %v993 = vadd.f32 %v941, %v992
    %v994 = vpop.f32.mrf.mxu0
    %v995 = vpop.f32.mrf.mxu0
    %v996 = vadd.f32 %v941, %v995
    %v997 = vpop.f32.mrf.mxu0
    %998 = vdwg.mxu0
    %v999 = vld [vmem:[%s5] sm:$0xf]
    %v1000 = vld [vmem:[%s5 + $0x4] sm:$0xf]
    %v1001 = vld [vmem:[%s5 + $0x8] sm:$0xf]
    %v1002 = vld [vmem:[%s5 + $0xc] sm:$0xf]
    %s1003 = scalar_lea.vmem %s7, 2
    %v1004 = vld [vmem:[%s1003] sm:$0x3]
    %s1005 = scalar_lea.vmem %s8, 2
    %v1006 = vld [vmem:[%s1005] sm:$0x3]
    %v1007 = vpack.c.bf16 %v1004, %v1004
    %v1012 = vunpack.c.l.b16 %v999
    %v1013 = vunpack.c.l.b16 %v1000
    %v1014 = vunpack.c.l.b16 %v1001
    %v1015 = vunpack.c.l.b16 %v1002
    %v1016 = vpack.c.b16 %v1013, %v1012
    %v1017 = vpack.c.b16 %v1015, %v1014
    %v1021 = vsel %vm258, %v1007, 0
    %1023 = vmatprep.subr.bf16.mxu0 0
    %1024 = vmatpush1.bf16.msra.mxu0 0
    %1025 = vmatprep.subr.bf16.mxu0 0
    %1026 = vmatpush1.bf16.msra.mxu0 0
    %1027 = vmatprep.subr.bf16.mxu0 0
    %1028 = vmatpush1.bf16.msra.mxu0 0
    %1029 = vmatprep.subr.bf16.mxu0 0
    %1030 = vmatpush1.bf16.msra.mxu0 0
    %1031 = vmatprep.subr.bf16.mxu0 0
    %1032 = vmatpush1.bf16.msra.mxu0 0
    %1033 = vmatprep.subr.bf16.mxu0 0
    %1034 = vmatpush1.bf16.msra.mxu0 0
    %1035 = vmatprep.subr.bf16.mxu0 0
    %1036 = vmatpush1.bf16.msra.mxu0 %v1017
    %1037 = vmatprep.subr.bf16.mxu0 0
    %1038 = vmatpush1.bf16.msra.mxu0 %v1016
    %1039 = vmatprep.subr.bf16.mxu0 0
    %1040 = vmatpush2.bf16.msra.mxu0 0
    %1041 = vmatprep.subr.bf16.mxu0 0
    %1042 = vmatpush2.bf16.msra.mxu0 0
    %1043 = vmatprep.subr.bf16.mxu0 0
    %1044 = vmatpush2.bf16.msra.mxu0 0
    %1045 = vmatprep.subr.bf16.mxu0 0
    %1046 = vmatpush2.bf16.msra.mxu0 0
    %1047 = vmatprep.subr.bf16.mxu0 0
    %1048 = vmatpush2.bf16.msra.mxu0 0
    %1049 = vmatprep.subr.bf16.mxu0 0
    %1050 = vmatpush2.bf16.msra.mxu0 0
    %1051 = vmatprep.subr.bf16.mxu0 0
    %1052 = vmatpush2.bf16.msra.mxu0 0
    %1053 = vmatprep.subr.bf16.mxu0 0
    %1054 = vmatpush2.bf16.msra.mxu0 0
    %1055 = vmatprep.mubr.bf16.mxu0 0
    %1056 = vmatmul.mubr.bf16.gmra.mxu0 %v1021
    %v1057 = vpop.f32.mrf.mxu0
    %v1058 = vadd.f32 0.0, %v1057
    %v1059 = vpop.f32.mrf.mxu0
    %v1060 = vpop.f32.mrf.mxu0
    %v1061 = vpop.f32.mrf.mxu0
    %1062 = vdwg.mxu0
    %v1063 = vadd.f32 %v993, %v1058
    %v1064 = vxor.u32 %v1063, 2147483648
    %v1065 = vmul.f32 %v1064, 1.442695
    %v1066 = vpow.pop %v1065
    %v1067 = vadd.f32 %v1066, 1.0
    %v1068 = vrcp.pop %v1067
    %v1069 = vmul.f32 1.0, %v1068
    %v1070 = vtanh.pop %v1063
    %1072 = vrot.lane.b32.xlu0 %v1006, 32
    %v1073 = vpop.permute.xlu0 %1072
    %v1075 = vmul.f32 %v1069, %v1073
    %1077 = vrot.lane.b32.xlu0 %v1070, 64
    %v1078 = vpop.permute.xlu0 %1077
    %v1080 = vmul.f32 %v1069, %v1078
    %1082 = vrot.lane.b32.xlu0 %v1080, 32
    %v1083 = vpop.permute.xlu0 %1082
    %v1085 = vadd.f32 %v1075, %v1083
    %v1086 = vtanh.pop %v1085
    %1088 = vrot.lane.b32.xlu0 %v1086, 64
    %v1089 = vpop.permute.xlu0 %1088
    %v1091 = vmul.f32 %v1069, %v1089
    %1093 = vrot.lane.b32.xlu0 %v1091, 32
    %v1094 = vpop.permute.xlu0 %1093
    %1096 = vst.msk [vmem:[#allocation2] sm:$0x3] %vm335, %v1094
    %v1097 = vpack.c.bf16 %v1091, %v1091
    %1099 = vrot.lane.b32.xlu0 %v1097, 32
    %v1100 = vpop.permute.xlu0 %1099
    %v1102 = vsel %vm258, %v1100, 0
    %1104 = vmatprep.subr.bf16.mxu0 0
    %1105 = vmatpush1.bf16.msra.mxu0 0
    %1106 = vmatprep.subr.bf16.mxu0 0
    %1107 = vmatpush1.bf16.msra.mxu0 0
    %1108 = vmatprep.subr.bf16.mxu0 0
    %1109 = vmatpush1.bf16.msra.mxu0 0
    %1110 = vmatprep.subr.bf16.mxu0 0
    %1111 = vmatpush1.bf16.msra.mxu0 0
    %1112 = vmatprep.subr.bf16.mxu0 0
    %1113 = vmatpush1.bf16.msra.mxu0 0
    %1114 = vmatprep.subr.bf16.mxu0 0
    %1115 = vmatpush1.bf16.msra.mxu0 0
    %1116 = vmatprep.subr.bf16.mxu0 0
    %1117 = vmatpush1.bf16.msra.mxu0 %v1017
    %1118 = vmatprep.subr.bf16.mxu0 0
    %1119 = vmatpush1.bf16.msra.mxu0 %v1016
    %1120 = vmatprep.subr.bf16.mxu0 0
    %1121 = vmatpush2.bf16.msra.mxu0 0
    %1122 = vmatprep.subr.bf16.mxu0 0
    %1123 = vmatpush2.bf16.msra.mxu0 0
    %1124 = vmatprep.subr.bf16.mxu0 0
    %1125 = vmatpush2.bf16.msra.mxu0 0
    %1126 = vmatprep.subr.bf16.mxu0 0
    %1127 = vmatpush2.bf16.msra.mxu0 0
    %1128 = vmatprep.subr.bf16.mxu0 0
    %1129 = vmatpush2.bf16.msra.mxu0 0
    %1130 = vmatprep.subr.bf16.mxu0 0
    %1131 = vmatpush2.bf16.msra.mxu0 0
    %1132 = vmatprep.subr.bf16.mxu0 0
    %1133 = vmatpush2.bf16.msra.mxu0 0
    %1134 = vmatprep.subr.bf16.mxu0 0
    %1135 = vmatpush2.bf16.msra.mxu0 0
    %1136 = vmatprep.mubr.bf16.mxu0 0
    %1137 = vmatmul.mubr.bf16.gmra.mxu0 %v1102
    %v1138 = vpop.f32.mrf.mxu0
    %v1139 = vadd.f32 0.0, %v1138
    %v1140 = vpop.f32.mrf.mxu0
    %v1141 = vpop.f32.mrf.mxu0
    %v1142 = vpop.f32.mrf.mxu0
    %1143 = vdwg.mxu0
    %v1145 = vrot.slane %v1139, 6
    %v1147 = vadd.f32 %v993, %v1145
    %v1148 = vxor.u32 %v1147, 2147483648
    %v1149 = vmul.f32 %v1148, 1.442695
    %v1150 = vpow.pop %v1149
    %v1151 = vadd.f32 %v1150, 1.0
    %v1152 = vrcp.pop %v1151
    %v1153 = vmul.f32 1.0, %v1152
    %v1154 = vtanh.pop %v1147
    %v1156 = vrot.slane %v1085, 6
    %v1158 = vmul.f32 %v1153, %v1156
    %1160 = vrot.lane.b32.xlu0 %v1154, 64
    %v1161 = vpop.permute.xlu0 %1160
    %v1163 = vmul.f32 %v1153, %v1161
    %1165 = vrot.lane.b32.xlu0 %v1163, 32
    %v1166 = vpop.permute.xlu0 %1165
    %v1168 = vadd.f32 %v1158, %v1166
    %v1169 = vtanh.pop %v1168
    %1171 = vrot.lane.b32.xlu0 %v1169, 64
    %v1172 = vpop.permute.xlu0 %1171
    %v1174 = vmul.f32 %v1153, %v1172
    %1176 = vrot.lane.b32.xlu0 %v1174, 32
    %v1177 = vpop.permute.xlu0 %1176
    %1179 = vst.msk [vmem:[#allocation2] sm:$0xc] %vm419, %v1177
    %v1180 = vpack.c.bf16 %v1174, %v1174
    %v1182 = vrot.slane %v1180, 1
    %1183 = vrot.lane.b32.xlu0 %v1182, 32
    %v1184 = vpop.permute.xlu0 %1183
    %v1186 = vsel %vm258, %v1184, 0
    %1188 = vmatprep.subr.bf16.mxu0 0
    %1189 = vmatpush1.bf16.msra.mxu0 0
    %1190 = vmatprep.subr.bf16.mxu0 0
    %1191 = vmatpush1.bf16.msra.mxu0 0
    %1192 = vmatprep.subr.bf16.mxu0 0
    %1193 = vmatpush1.bf16.msra.mxu0 0
    %1194 = vmatprep.subr.bf16.mxu0 0
    %1195 = vmatpush1.bf16.msra.mxu0 0
    %1196 = vmatprep.subr.bf16.mxu0 0
    %1197 = vmatpush1.bf16.msra.mxu0 0
    %1198 = vmatprep.subr.bf16.mxu0 0
    %1199 = vmatpush1.bf16.msra.mxu0 0
    %1200 = vmatprep.subr.bf16.mxu0 0
    %1201 = vmatpush1.bf16.msra.mxu0 %v1017
    %1202 = vmatprep.subr.bf16.mxu0 0
    %1203 = vmatpush1.bf16.msra.mxu0 %v1016
    %1204 = vmatprep.subr.bf16.mxu0 0
    %1205 = vmatpush2.bf16.msra.mxu0 0
    %1206 = vmatprep.subr.bf16.mxu0 0
    %1207 = vmatpush2.bf16.msra.mxu0 0
    %1208 = vmatprep.subr.bf16.mxu0 0
    %1209 = vmatpush2.bf16.msra.mxu0 0
    %1210 = vmatprep.subr.bf16.mxu0 0
    %1211 = vmatpush2.bf16.msra.mxu0 0
    %1212 = vmatprep.subr.bf16.mxu0 0
    %1213 = vmatpush2.bf16.msra.mxu0 0
    %1214 = vmatprep.subr.bf16.mxu0 0
    %1215 = vmatpush2.bf16.msra.mxu0 0
    %1216 = vmatprep.subr.bf16.mxu0 0
    %1217 = vmatpush2.bf16.msra.mxu0 0
    %1218 = vmatprep.subr.bf16.mxu0 0
    %1219 = vmatpush2.bf16.msra.mxu0 0
    %1220 = vmatprep.mubr.bf16.mxu0 0
    %1221 = vmatmul.mubr.bf16.gmra.mxu0 %v1186
    %v1222 = vpop.f32.mrf.mxu0
    %v1223 = vadd.f32 0.0, %v1222
    %v1224 = vpop.f32.mrf.mxu0
    %v1225 = vpop.f32.mrf.mxu0
    %v1226 = vpop.f32.mrf.mxu0
    %1227 = vdwg.mxu0
    %v1229 = vrot.slane %v1223, 4
    %v1231 = vadd.f32 %v993, %v1229
    %v1232 = vxor.u32 %v1231, 2147483648
    %v1233 = vmul.f32 %v1232, 1.442695
    %v1234 = vpow.pop %v1233
    %v1235 = vadd.f32 %v1234, 1.0
    %v1236 = vrcp.pop %v1235
    %v1237 = vmul.f32 1.0, %v1236
    %v1238 = vtanh.pop %v1231
    %v1240 = vrot.slane %v1168, 6
    %v1242 = vmul.f32 %v1237, %v1240
    %1244 = vrot.lane.b32.xlu0 %v1238, 64
    %v1245 = vpop.permute.xlu0 %1244
    %v1247 = vmul.f32 %v1237, %v1245
    %1249 = vrot.lane.b32.xlu0 %v1247, 32
    %v1250 = vpop.permute.xlu0 %1249
    %v1252 = vadd.f32 %v1242, %v1250
    %v1253 = vtanh.pop %v1252
    %1255 = vrot.lane.b32.xlu0 %v1253, 64
    %v1256 = vpop.permute.xlu0 %1255
    %v1258 = vmul.f32 %v1237, %v1256
    %1260 = vrot.lane.b32.xlu0 %v1258, 32
    %v1261 = vpop.permute.xlu0 %1260
    %1263 = vst.msk [vmem:[#allocation2] sm:$0x30] %vm504, %v1261
    %v1264 = vpack.c.bf16 %v1258, %v1258
    %v1266 = vrot.slane %v1264, 2
    %1267 = vrot.lane.b32.xlu0 %v1266, 32
    %v1268 = vpop.permute.xlu0 %1267
    %v1270 = vsel %vm258, %v1268, 0
    %1272 = vmatprep.subr.bf16.mxu0 0
    %1273 = vmatpush1.bf16.msra.mxu0 0
    %1274 = vmatprep.subr.bf16.mxu0 0
    %1275 = vmatpush1.bf16.msra.mxu0 0
    %1276 = vmatprep.subr.bf16.mxu0 0
    %1277 = vmatpush1.bf16.msra.mxu0 0
    %1278 = vmatprep.subr.bf16.mxu0 0
    %1279 = vmatpush1.bf16.msra.mxu0 0
    %1280 = vmatprep.subr.bf16.mxu0 0
    %1281 = vmatpush1.bf16.msra.mxu0 0
    %1282 = vmatprep.subr.bf16.mxu0 0
    %1283 = vmatpush1.bf16.msra.mxu0 0
    %1284 = vmatprep.subr.bf16.mxu0 0
    %1285 = vmatpush1.bf16.msra.mxu0 %v1017
    %1286 = vmatprep.subr.bf16.mxu0 0
    %1287 = vmatpush1.bf16.msra.mxu0 %v1016
    %1288 = vmatprep.subr.bf16.mxu0 0
    %1289 = vmatpush2.bf16.msra.mxu0 0
    %1290 = vmatprep.subr.bf16.mxu0 0
    %1291 = vmatpush2.bf16.msra.mxu0 0
    %1292 = vmatprep.subr.bf16.mxu0 0
    %1293 = vmatpush2.bf16.msra.mxu0 0
    %1294 = vmatprep.subr.bf16.mxu0 0
    %1295 = vmatpush2.bf16.msra.mxu0 0
    %1296 = vmatprep.subr.bf16.mxu0 0
    %1297 = vmatpush2.bf16.msra.mxu0 0
    %1298 = vmatprep.subr.bf16.mxu0 0
    %1299 = vmatpush2.bf16.msra.mxu0 0
    %1300 = vmatprep.subr.bf16.mxu0 0
    %1301 = vmatpush2.bf16.msra.mxu0 0
    %1302 = vmatprep.subr.bf16.mxu0 0
    %1303 = vmatpush2.bf16.msra.mxu0 0
    %1304 = vmatprep.mubr.bf16.mxu0 0
    %1305 = vmatmul.mubr.bf16.gmra.mxu0 %v1270
    %v1306 = vpop.f32.mrf.mxu0
    %v1307 = vadd.f32 0.0, %v1306
    %v1308 = vpop.f32.mrf.mxu0
    %v1309 = vpop.f32.mrf.mxu0
    %v1310 = vpop.f32.mrf.mxu0
    %1311 = vdwg.mxu0
    %v1313 = vrot.slane %v1307, 2
    %v1315 = vadd.f32 %v993, %v1313
    %v1316 = vxor.u32 %v1315, 2147483648
    %v1317 = vmul.f32 %v1316, 1.442695
    %v1318 = vpow.pop %v1317
    %v1319 = vadd.f32 %v1318, 1.0
    %v1320 = vrcp.pop %v1319
    %v1321 = vmul.f32 1.0, %v1320
    %v1322 = vtanh.pop %v1315
    %v1324 = vrot.slane %v1252, 6
    %v1326 = vmul.f32 %v1321, %v1324
    %1328 = vrot.lane.b32.xlu0 %v1322, 64
    %v1329 = vpop.permute.xlu0 %1328
    %v1331 = vmul.f32 %v1321, %v1329
    %1333 = vrot.lane.b32.xlu0 %v1331, 32
    %v1334 = vpop.permute.xlu0 %1333
    %v1336 = vadd.f32 %v1326, %v1334
    %v1337 = vtanh.pop %v1336
    %1339 = vrot.lane.b32.xlu0 %v1337, 64
    %v1340 = vpop.permute.xlu0 %1339
    %v1342 = vmul.f32 %v1321, %v1340
    %1344 = vrot.lane.b32.xlu0 %v1342, 32
    %v1345 = vpop.permute.xlu0 %1344
    %1347 = vst.msk [vmem:[#allocation2] sm:$0xc0] %vm589, %v1345
    %v1348 = vpack.c.bf16 %v1342, %v1342
    %v1350 = vrot.slane %v1348, 3
    %1351 = vrot.lane.b32.xlu0 %v1350, 32
    %v1352 = vpop.permute.xlu0 %1351
    %v1354 = vsel %vm258, %v1352, 0
    %1356 = vmatprep.subr.bf16.mxu0 0
    %1357 = vmatpush1.bf16.msra.mxu0 0
    %1358 = vmatprep.subr.bf16.mxu0 0
    %1359 = vmatpush1.bf16.msra.mxu0 0
    %1360 = vmatprep.subr.bf16.mxu0 0
    %1361 = vmatpush1.bf16.msra.mxu0 0
    %1362 = vmatprep.subr.bf16.mxu0 0
    %1363 = vmatpush1.bf16.msra.mxu0 0
    %1364 = vmatprep.subr.bf16.mxu0 0
    %1365 = vmatpush1.bf16.msra.mxu0 0
    %1366 = vmatprep.subr.bf16.mxu0 0
    %1367 = vmatpush1.bf16.msra.mxu0 0
    %1368 = vmatprep.subr.bf16.mxu0 0
    %1369 = vmatpush1.bf16.msra.mxu0 %v1017
    %1370 = vmatprep.subr.bf16.mxu0 0
    %1371 = vmatpush1.bf16.msra.mxu0 %v1016
    %1372 = vmatprep.subr.bf16.mxu0 0
    %1373 = vmatpush2.bf16.msra.mxu0 0
    %1374 = vmatprep.subr.bf16.mxu0 0
    %1375 = vmatpush2.bf16.msra.mxu0 0
    %1376 = vmatprep.subr.bf16.mxu0 0
    %1377 = vmatpush2.bf16.msra.mxu0 0
    %1378 = vmatprep.subr.bf16.mxu0 0
    %1379 = vmatpush2.bf16.msra.mxu0 0
    %1380 = vmatprep.subr.bf16.mxu0 0
    %1381 = vmatpush2.bf16.msra.mxu0 0
    %1382 = vmatprep.subr.bf16.mxu0 0
    %1383 = vmatpush2.bf16.msra.mxu0 0
    %1384 = vmatprep.subr.bf16.mxu0 0
    %1385 = vmatpush2.bf16.msra.mxu0 0
    %1386 = vmatprep.subr.bf16.mxu0 0
    %1387 = vmatpush2.bf16.msra.mxu0 0
    %1388 = vmatprep.mubr.bf16.mxu0 0
    %1389 = vmatmul.mubr.bf16.gmra.mxu0 %v1354
    %v1390 = vpop.f32.mrf.mxu0
    %v1391 = vadd.f32 0.0, %v1390
    %v1392 = vpop.f32.mrf.mxu0
    %v1393 = vpop.f32.mrf.mxu0
    %v1394 = vpop.f32.mrf.mxu0
    %1395 = vdwg.mxu0
    %v1396 = vadd.f32 %v996, %v1391
    %v1397 = vxor.u32 %v1396, 2147483648
    %v1398 = vmul.f32 %v1397, 1.442695
    %v1399 = vpow.pop %v1398
    %v1400 = vadd.f32 %v1399, 1.0
    %v1401 = vrcp.pop %v1400
    %v1402 = vmul.f32 1.0, %v1401
    %v1403 = vtanh.pop %v1396
    %v1405 = vrot.slane %v1336, 6
    %v1407 = vmul.f32 %v1402, %v1405
    %1409 = vrot.lane.b32.xlu0 %v1403, 64
    %v1410 = vpop.permute.xlu0 %1409
    %v1412 = vmul.f32 %v1402, %v1410
    %1414 = vrot.lane.b32.xlu0 %v1412, 32
    %v1415 = vpop.permute.xlu0 %1414
    %v1417 = vadd.f32 %v1407, %v1415
    %v1418 = vtanh.pop %v1417
    %1420 = vrot.lane.b32.xlu0 %v1418, 64
    %v1421 = vpop.permute.xlu0 %1420
    %v1423 = vmul.f32 %v1402, %v1421
    %1425 = vrot.lane.b32.xlu0 %v1423, 32
    %v1426 = vpop.permute.xlu0 %1425
    %1428 = vst.msk [vmem:[#allocation2 + $0x8] sm:$0x3] %vm335, %v1426
    %v1429 = vpack.c.bf16 %v1423, %v1423
    %1431 = vrot.lane.b32.xlu0 %v1429, 32
    %v1432 = vpop.permute.xlu0 %1431
    %v1434 = vsel %vm258, %v1432, 0
    %1436 = vmatprep.subr.bf16.mxu0 0
    %1437 = vmatpush1.bf16.msra.mxu0 0
    %1438 = vmatprep.subr.bf16.mxu0 0
    %1439 = vmatpush1.bf16.msra.mxu0 0
    %1440 = vmatprep.subr.bf16.mxu0 0
    %1441 = vmatpush1.bf16.msra.mxu0 0
    %1442 = vmatprep.subr.bf16.mxu0 0
    %1443 = vmatpush1.bf16.msra.mxu0 0
    %1444 = vmatprep.subr.bf16.mxu0 0
    %1445 = vmatpush1.bf16.msra.mxu0 0
    %1446 = vmatprep.subr.bf16.mxu0 0
    %1447 = vmatpush1.bf16.msra.mxu0 0
    %1448 = vmatprep.subr.bf16.mxu0 0
    %1449 = vmatpush1.bf16.msra.mxu0 %v1017
    %1450 = vmatprep.subr.bf16.mxu0 0
    %1451 = vmatpush1.bf16.msra.mxu0 %v1016
    %1452 = vmatprep.subr.bf16.mxu0 0
    %1453 = vmatpush2.bf16.msra.mxu0 0
    %1454 = vmatprep.subr.bf16.mxu0 0
    %1455 = vmatpush2.bf16.msra.mxu0 0
    %1456 = vmatprep.subr.bf16.mxu0 0
    %1457 = vmatpush2.bf16.msra.mxu0 0
    %1458 = vmatprep.subr.bf16.mxu0 0
    %1459 = vmatpush2.bf16.msra.mxu0 0
    %1460 = vmatprep.subr.bf16.mxu0 0
    %1461 = vmatpush2.bf16.msra.mxu0 0
    %1462 = vmatprep.subr.bf16.mxu0 0
    %1463 = vmatpush2.bf16.msra.mxu0 0
    %1464 = vmatprep.subr.bf16.mxu0 0
    %1465 = vmatpush2.bf16.msra.mxu0 0
    %1466 = vmatprep.subr.bf16.mxu0 0
    %1467 = vmatpush2.bf16.msra.mxu0 0
    %1468 = vmatprep.mubr.bf16.mxu0 0
    %1469 = vmatmul.mubr.bf16.gmra.mxu0 %v1434
    %v1470 = vpop.f32.mrf.mxu0
    %v1471 = vadd.f32 0.0, %v1470
    %v1472 = vpop.f32.mrf.mxu0
    %v1473 = vpop.f32.mrf.mxu0
    %v1474 = vpop.f32.mrf.mxu0
    %1475 = vdwg.mxu0
    %v1477 = vrot.slane %v1471, 6
    %v1479 = vadd.f32 %v996, %v1477
    %v1480 = vxor.u32 %v1479, 2147483648
    %v1481 = vmul.f32 %v1480, 1.442695
    %v1482 = vpow.pop %v1481
    %v1483 = vadd.f32 %v1482, 1.0
    %v1484 = vrcp.pop %v1483
    %v1485 = vmul.f32 1.0, %v1484
    %v1486 = vtanh.pop %v1479
    %v1488 = vrot.slane %v1417, 6
    %v1490 = vmul.f32 %v1485, %v1488
    %1492 = vrot.lane.b32.xlu0 %v1486, 64
    %v1493 = vpop.permute.xlu0 %1492
    %v1495 = vmul.f32 %v1485, %v1493
    %1497 = vrot.lane.b32.xlu0 %v1495, 32
    %v1498 = vpop.permute.xlu0 %1497
    %v1500 = vadd.f32 %v1490, %v1498
    %v1501 = vtanh.pop %v1500
    %1503 = vrot.lane.b32.xlu0 %v1501, 64
    %v1504 = vpop.permute.xlu0 %1503
    %v1506 = vmul.f32 %v1485, %v1504
    %1508 = vrot.lane.b32.xlu0 %v1506, 32
    %v1509 = vpop.permute.xlu0 %1508
    %1511 = vst.msk [vmem:[#allocation2 + $0x8] sm:$0xc] %vm419, %v1509
    %v1512 = vpack.c.bf16 %v1506, %v1506
    %v1514 = vrot.slane %v1512, 1
    %1515 = vrot.lane.b32.xlu0 %v1514, 32
    %v1516 = vpop.permute.xlu0 %1515
    %v1518 = vsel %vm258, %v1516, 0
    %1520 = vmatprep.subr.bf16.mxu0 0
    %1521 = vmatpush1.bf16.msra.mxu0 0
    %1522 = vmatprep.subr.bf16.mxu0 0
    %1523 = vmatpush1.bf16.msra.mxu0 0
    %1524 = vmatprep.subr.bf16.mxu0 0
    %1525 = vmatpush1.bf16.msra.mxu0 0
    %1526 = vmatprep.subr.bf16.mxu0 0
    %1527 = vmatpush1.bf16.msra.mxu0 0
    %1528 = vmatprep.subr.bf16.mxu0 0
    %1529 = vmatpush1.bf16.msra.mxu0 0
    %1530 = vmatprep.subr.bf16.mxu0 0
    %1531 = vmatpush1.bf16.msra.mxu0 0
    %1532 = vmatprep.subr.bf16.mxu0 0
    %1533 = vmatpush1.bf16.msra.mxu0 %v1017
    %1534 = vmatprep.subr.bf16.mxu0 0
    %1535 = vmatpush1.bf16.msra.mxu0 %v1016
    %1536 = vmatprep.subr.bf16.mxu0 0
    %1537 = vmatpush2.bf16.msra.mxu0 0
    %1538 = vmatprep.subr.bf16.mxu0 0
    %1539 = vmatpush2.bf16.msra.mxu0 0
    %1540 = vmatprep.subr.bf16.mxu0 0
    %1541 = vmatpush2.bf16.msra.mxu0 0
    %1542 = vmatprep.subr.bf16.mxu0 0
    %1543 = vmatpush2.bf16.msra.mxu0 0
    %1544 = vmatprep.subr.bf16.mxu0 0
    %1545 = vmatpush2.bf16.msra.mxu0 0
    %1546 = vmatprep.subr.bf16.mxu0 0
    %1547 = vmatpush2.bf16.msra.mxu0 0
    %1548 = vmatprep.subr.bf16.mxu0 0
    %1549 = vmatpush2.bf16.msra.mxu0 0
    %1550 = vmatprep.subr.bf16.mxu0 0
    %1551 = vmatpush2.bf16.msra.mxu0 0
    %1552 = vmatprep.mubr.bf16.mxu0 0
    %1553 = vmatmul.mubr.bf16.gmra.mxu0 %v1518
    %v1554 = vpop.f32.mrf.mxu0
    %v1555 = vadd.f32 0.0, %v1554
    %v1556 = vpop.f32.mrf.mxu0
    %v1557 = vpop.f32.mrf.mxu0
    %v1558 = vpop.f32.mrf.mxu0
    %1559 = vdwg.mxu0
    %v1561 = vrot.slane %v1555, 4
    %v1563 = vadd.f32 %v996, %v1561
    %v1564 = vxor.u32 %v1563, 2147483648
    %v1565 = vmul.f32 %v1564, 1.442695
    %v1566 = vpow.pop %v1565
    %v1567 = vadd.f32 %v1566, 1.0
    %v1568 = vrcp.pop %v1567
    %v1569 = vmul.f32 1.0, %v1568
    %v1570 = vtanh.pop %v1563
    %v1572 = vrot.slane %v1500, 6
    %v1574 = vmul.f32 %v1569, %v1572
    %1576 = vrot.lane.b32.xlu0 %v1570, 64
    %v1577 = vpop.permute.xlu0 %1576
    %v1579 = vmul.f32 %v1569, %v1577
    %1581 = vrot.lane.b32.xlu0 %v1579, 32
    %v1582 = vpop.permute.xlu0 %1581
    %v1584 = vadd.f32 %v1574, %v1582
    %v1585 = vtanh.pop %v1584
    %1587 = vrot.lane.b32.xlu0 %v1585, 64
    %v1588 = vpop.permute.xlu0 %1587
    %v1590 = vmul.f32 %v1569, %v1588
    %1592 = vrot.lane.b32.xlu0 %v1590, 32
    %v1593 = vpop.permute.xlu0 %1592
    %1595 = vst.msk [vmem:[#allocation2 + $0x8] sm:$0x30] %vm504, %v1593
    %v1596 = vpack.c.bf16 %v1590, %v1590
    %v1598 = vrot.slane %v1596, 2
    %1599 = vrot.lane.b32.xlu0 %v1598, 32
    %v1600 = vpop.permute.xlu0 %1599
    %v1602 = vsel %vm258, %v1600, 0
    %1604 = vmatprep.subr.bf16.mxu0 0
    %1605 = vmatpush1.bf16.msra.mxu0 0
    %1606 = vmatprep.subr.bf16.mxu0 0
    %1607 = vmatpush1.bf16.msra.mxu0 0
    %1608 = vmatprep.subr.bf16.mxu0 0
    %1609 = vmatpush1.bf16.msra.mxu0 0
    %1610 = vmatprep.subr.bf16.mxu0 0
    %1611 = vmatpush1.bf16.msra.mxu0 0
    %1612 = vmatprep.subr.bf16.mxu0 0
    %1613 = vmatpush1.bf16.msra.mxu0 0
    %1614 = vmatprep.subr.bf16.mxu0 0
    %1615 = vmatpush1.bf16.msra.mxu0 0
    %1616 = vmatprep.subr.bf16.mxu0 0
    %1617 = vmatpush1.bf16.msra.mxu0 %v1017
    %1618 = vmatprep.subr.bf16.mxu0 0
    %1619 = vmatpush1.bf16.msra.mxu0 %v1016
    %1620 = vmatprep.subr.bf16.mxu0 0
    %1621 = vmatpush2.bf16.msra.mxu0 0
    %1622 = vmatprep.subr.bf16.mxu0 0
    %1623 = vmatpush2.bf16.msra.mxu0 0
    %1624 = vmatprep.subr.bf16.mxu0 0
    %1625 = vmatpush2.bf16.msra.mxu0 0
    %1626 = vmatprep.subr.bf16.mxu0 0
    %1627 = vmatpush2.bf16.msra.mxu0 0
    %1628 = vmatprep.subr.bf16.mxu0 0
    %1629 = vmatpush2.bf16.msra.mxu0 0
    %1630 = vmatprep.subr.bf16.mxu0 0
    %1631 = vmatpush2.bf16.msra.mxu0 0
    %1632 = vmatprep.subr.bf16.mxu0 0
    %1633 = vmatpush2.bf16.msra.mxu0 0
    %1634 = vmatprep.subr.bf16.mxu0 0
    %1635 = vmatpush2.bf16.msra.mxu0 0
    %1636 = vmatprep.mubr.bf16.mxu0 0
    %1637 = vmatmul.mubr.bf16.gmra.mxu0 %v1602
    %v1638 = vpop.f32.mrf.mxu0
    %v1639 = vadd.f32 0.0, %v1638
    %v1640 = vpop.f32.mrf.mxu0
    %v1641 = vpop.f32.mrf.mxu0
    %v1642 = vpop.f32.mrf.mxu0
    %1643 = vdwg.mxu0
    %v1645 = vrot.slane %v1639, 2
    %v1647 = vadd.f32 %v996, %v1645
    %v1648 = vxor.u32 %v1647, 2147483648
    %v1649 = vmul.f32 %v1648, 1.442695
    %v1650 = vpow.pop %v1649
    %v1651 = vadd.f32 %v1650, 1.0
    %v1652 = vrcp.pop %v1651
    %v1653 = vmul.f32 1.0, %v1652
    %v1654 = vtanh.pop %v1647
    %v1656 = vrot.slane %v1584, 6
    %v1658 = vmul.f32 %v1653, %v1656
    %1660 = vrot.lane.b32.xlu0 %v1654, 64
    %v1661 = vpop.permute.xlu0 %1660
    %v1663 = vmul.f32 %v1653, %v1661
    %1665 = vrot.lane.b32.xlu0 %v1663, 32
    %v1666 = vpop.permute.xlu0 %1665
    %v1668 = vadd.f32 %v1658, %v1666
    %v1669 = vtanh.pop %v1668
    %1671 = vrot.lane.b32.xlu0 %v1669, 64
    %v1672 = vpop.permute.xlu0 %1671
    %v1674 = vmul.f32 %v1653, %v1672
    %1676 = vrot.lane.b32.xlu0 %v1674, 32
    %v1677 = vpop.permute.xlu0 %1676
    %1679 = vst.msk [vmem:[#allocation2 + $0x8] sm:$0xc0] %vm589, %v1677
    %s1680 = scalar_lea.vmem %s14, 2
    %1681 = vst.msk [vmem:[%s1680 - $0x6] sm:$0xc0] %vm589, %v1677
    %1683 = vrot.lane.b32.xlu0 %v1668, 96
    %v1684 = vpop.permute.xlu0 %1683
    %s1686 = scalar_lea.vmem %s15, 2
    %1687 = vst.msk [vmem:[%s1686 - $0x6] sm:$0xc0] %vm589, %v1684
    %v1688 = vld [vmem:[#allocation2] sm:$0xff]
    %v1689 = vld [vmem:[#allocation2 + $0x8] sm:$0xff]
    %v1690 = vpack.c.bf16 %v1689, %v1688
    %v1691 = vld [vmem:[%s9] sm:$0xff]
    %v1692 = vld [vmem:[%s9 + $0x8] sm:$0xff]
    %v1693 = vld [vmem:[%s9 + $0x10] sm:$0xff]
    %v1694 = vld [vmem:[%s9 + $0x18] sm:$0xff]
    %v1695 = vld [vmem:[#allocation11] sm:$0x3]
    %v1697 = vlaneseq
    %v1698 = vshrl.u32 %v1697, 7
    %v1699 = vsub.s32 0, %v1698
    %v1700 = vrot.slane %v1695, %v1699
    %v1701 = vlaneseq
    %v1702 = vshrl.u32 %v1701, 7
    %v1703 = vsub.s32 1, %v1702
    %v1704 = vrot.slane %v1695, %v1703
    %v1711 = vunpack.c.l.b16 %v1691
    %v1712 = vunpack.c.h.b16 %v1691
    %v1713 = vunpack.c.l.b16 %v1692
    %v1714 = vunpack.c.h.b16 %v1692
    %v1715 = vunpack.c.l.b16 %v1693
    %v1716 = vunpack.c.h.b16 %v1693
    %v1717 = vunpack.c.l.b16 %v1694
    %v1718 = vunpack.c.h.b16 %v1694
    %v1719 = vpack.c.b16 %v1713, %v1711
    %v1720 = vpack.c.b16 %v1714, %v1712
    %v1721 = vpack.c.b16 %v1717, %v1715
    %v1722 = vpack.c.b16 %v1718, %v1716
    %v1728 = vsel %vm258, %v1690, 0
    %1730 = vmatprep.subr.bf16.mxu0 0
    %1731 = vmatpush1.bf16.msra.mxu0 0
    %1732 = vmatprep.subr.bf16.mxu0 0
    %1733 = vmatpush1.bf16.msra.mxu0 0
    %1734 = vmatprep.subr.bf16.mxu0 0
    %1735 = vmatpush1.bf16.msra.mxu0 0
    %1736 = vmatprep.subr.bf16.mxu0 0
    %1737 = vmatpush1.bf16.msra.mxu0 0
    %1738 = vmatprep.subr.bf16.mxu0 0
    %1739 = vmatpush1.bf16.msra.mxu0 0
    %1740 = vmatprep.subr.bf16.mxu0 0
    %1741 = vmatpush1.bf16.msra.mxu0 0
    %1742 = vmatprep.subr.bf16.mxu0 %v1722
    %1743 = vmatpush1.bf16.msra.mxu0 %v1721
    %1744 = vmatprep.subr.bf16.mxu0 %v1720
    %1745 = vmatpush1.bf16.msra.mxu0 %v1719
    %1746 = vmatprep.subr.bf16.mxu0 0
    %1747 = vmatpush2.bf16.msra.mxu0 0
    %1748 = vmatprep.subr.bf16.mxu0 0
    %1749 = vmatpush2.bf16.msra.mxu0 0
    %1750 = vmatprep.subr.bf16.mxu0 0
    %1751 = vmatpush2.bf16.msra.mxu0 0
    %1752 = vmatprep.subr.bf16.mxu0 0
    %1753 = vmatpush2.bf16.msra.mxu0 0
    %1754 = vmatprep.subr.bf16.mxu0 0
    %1755 = vmatpush2.bf16.msra.mxu0 0
    %1756 = vmatprep.subr.bf16.mxu0 0
    %1757 = vmatpush2.bf16.msra.mxu0 0
    %1758 = vmatprep.subr.bf16.mxu0 0
    %1759 = vmatpush2.bf16.msra.mxu0 0
    %1760 = vmatprep.subr.bf16.mxu0 0
    %1761 = vmatpush2.bf16.msra.mxu0 0
    %1762 = vmatprep.mubr.bf16.mxu0 0
    %1763 = vmatmul.mubr.bf16.gmra.mxu0 %v1728
    %v1764 = vpop.f32.mrf.mxu0
    %v1765 = vadd.f32 %v1700, %v1764
    %v1766 = vpop.f32.mrf.mxu0
    %v1767 = vadd.f32 %v1704, %v1766
    %v1768 = vpop.f32.mrf.mxu0
    %v1769 = vadd.f32 %v1700, %v1768
    %v1770 = vpop.f32.mrf.mxu0
    %v1771 = vadd.f32 %v1704, %v1770
    %1772 = vdwg.mxu0
    %vm1773 = vcmp.gt.f32.partialorder %v1765, 0.0
    %vm1774 = vcmp.gt.f32.partialorder %v1767, 0.0
    %vm1775 = vcmp.gt.f32.partialorder %v1769, 0.0
    %vm1776 = vcmp.gt.f32.partialorder %v1771, 0.0
    %v1777 = vmul.f32 %v1765, 0.1
    %v1778 = vmul.f32 %v1767, 0.1
    %v1779 = vmul.f32 %v1769, 0.1
    %v1780 = vmul.f32 %v1771, 0.1
    %v1781 = vsel %vm1773, %v1765, %v1777
    %v1782 = vsel %vm1774, %v1767, %v1778
    %v1783 = vsel %vm1775, %v1769, %v1779
    %v1784 = vsel %vm1776, %v1771, %v1780
    %v1785 = vpack.c.bf16 %v1783, %v1781
    %v1786 = vpack.c.bf16 %v1784, %v1782
    %v1787 = vld [vmem:[%s11] sm:$0xf]
    %v1788 = vld [vmem:[%s11 + $0x4] sm:$0xf]
    %v1789 = vld [vmem:[%s11 + $0x8] sm:$0xf]
    %v1790 = vld [vmem:[%s11 + $0xc] sm:$0xf]
    %v1791 = vld [vmem:[%s11 + $0x10] sm:$0xf]
    %v1792 = vld [vmem:[%s11 + $0x14] sm:$0xf]
    %v1793 = vld [vmem:[%s11 + $0x18] sm:$0xf]
    %v1794 = vld [vmem:[%s11 + $0x1c] sm:$0xf]
    %v1795 = vld [vmem:[%s11 + $0x20] sm:$0xf]
    %v1796 = vld [vmem:[%s11 + $0x24] sm:$0xf]
    %v1797 = vld [vmem:[%s11 + $0x28] sm:$0xf]
    %v1798 = vld [vmem:[%s11 + $0x2c] sm:$0xf]
    %v1799 = vld [vmem:[%s11 + $0x30] sm:$0xf]
    %v1800 = vld [vmem:[%s11 + $0x34] sm:$0xf]
    %v1801 = vld [vmem:[%s11 + $0x38] sm:$0xf]
    %v1802 = vld [vmem:[%s11 + $0x3c] sm:$0xf]
    %v1803 = vld [vmem:[%s11 + $0x40] sm:$0xf]
    %v1804 = vld [vmem:[%s11 + $0x44] sm:$0xf]
    %v1805 = vld [vmem:[%s11 + $0x48] sm:$0xf]
    %v1806 = vld [vmem:[%s11 + $0x4c] sm:$0xf]
    %v1807 = vld [vmem:[%s11 + $0x50] sm:$0xf]
    %v1808 = vld [vmem:[%s11 + $0x54] sm:$0xf]
    %v1809 = vld [vmem:[%s11 + $0x58] sm:$0xf]
    %v1810 = vld [vmem:[%s11 + $0x5c] sm:$0xf]
    %v1811 = vld [vmem:[%s11 + $0x60] sm:$0xf]
    %v1812 = vld [vmem:[%s11 + $0x64] sm:$0xf]
    %v1813 = vld [vmem:[%s11 + $0x68] sm:$0xf]
    %v1814 = vld [vmem:[%s11 + $0x6c] sm:$0xf]
    %v1815 = vld [vmem:[%s11 + $0x70] sm:$0xf]
    %v1816 = vld [vmem:[%s11 + $0x74] sm:$0xf]
    %v1817 = vld [vmem:[%s11 + $0x78] sm:$0xf]
    %v1818 = vld [vmem:[%s11 + $0x7c] sm:$0xf]
    %v1819 = vld [vmem:[%s12] sm:$0x1]
    %v1821 = vlaneseq
    %v1822 = vshrl.u32 %v1821, 7
    %v1823 = vsub.s32 0, %v1822
    %v1824 = vrot.slane %v1819, %v1823
    %v1858 = vunpack.c.l.b16 %v1787
    %v1859 = vunpack.c.l.b16 %v1788
    %v1860 = vunpack.c.l.b16 %v1789
    %v1861 = vunpack.c.l.b16 %v1790
    %v1862 = vunpack.c.l.b16 %v1791
    %v1863 = vunpack.c.l.b16 %v1792
    %v1864 = vunpack.c.l.b16 %v1793
    %v1865 = vunpack.c.l.b16 %v1794
    %v1866 = vunpack.c.l.b16 %v1795
    %v1867 = vunpack.c.l.b16 %v1796
    %v1868 = vunpack.c.l.b16 %v1797
    %v1869 = vunpack.c.l.b16 %v1798
    %v1870 = vunpack.c.l.b16 %v1799
    %v1871 = vunpack.c.l.b16 %v1800
    %v1872 = vunpack.c.l.b16 %v1801
    %v1873 = vunpack.c.l.b16 %v1802
    %v1874 = vunpack.c.l.b16 %v1803
    %v1875 = vunpack.c.l.b16 %v1804
    %v1876 = vunpack.c.l.b16 %v1805
    %v1877 = vunpack.c.l.b16 %v1806
    %v1878 = vunpack.c.l.b16 %v1807
    %v1879 = vunpack.c.l.b16 %v1808
    %v1880 = vunpack.c.l.b16 %v1809
    %v1881 = vunpack.c.l.b16 %v1810
    %v1882 = vunpack.c.l.b16 %v1811
    %v1883 = vunpack.c.l.b16 %v1812
    %v1884 = vunpack.c.l.b16 %v1813
    %v1885 = vunpack.c.l.b16 %v1814
    %v1886 = vunpack.c.l.b16 %v1815
    %v1887 = vunpack.c.l.b16 %v1816
    %v1888 = vunpack.c.l.b16 %v1817
    %v1889 = vunpack.c.l.b16 %v1818
    %v1890 = vpack.c.b16 %v1859, %v1858
    %v1891 = vpack.c.b16 %v1861, %v1860
    %v1892 = vpack.c.b16 %v1863, %v1862
    %v1893 = vpack.c.b16 %v1865, %v1864
    %v1894 = vpack.c.b16 %v1867, %v1866
    %v1895 = vpack.c.b16 %v1869, %v1868
    %v1896 = vpack.c.b16 %v1871, %v1870
    %v1897 = vpack.c.b16 %v1873, %v1872
    %v1898 = vpack.c.b16 %v1875, %v1874
    %v1899 = vpack.c.b16 %v1877, %v1876
    %v1900 = vpack.c.b16 %v1879, %v1878
    %v1901 = vpack.c.b16 %v1881, %v1880
    %v1902 = vpack.c.b16 %v1883, %v1882
    %v1903 = vpack.c.b16 %v1885, %v1884
    %v1904 = vpack.c.b16 %v1887, %v1886
    %v1905 = vpack.c.b16 %v1889, %v1888
    %1922 = vmatprep.subr.bf16.mxu0 0
    %1923 = vmatpush1.bf16.msra.mxu0 %v1897
    %1924 = vmatprep.subr.bf16.mxu0 0
    %1925 = vmatpush1.bf16.msra.mxu0 %v1896
    %1926 = vmatprep.subr.bf16.mxu0 0
    %1927 = vmatpush1.bf16.msra.mxu0 %v1895
    %1928 = vmatprep.subr.bf16.mxu0 0
    %1929 = vmatpush1.bf16.msra.mxu0 %v1894
    %1930 = vmatprep.subr.bf16.mxu0 0
    %1931 = vmatpush1.bf16.msra.mxu0 %v1893
    %1932 = vmatprep.subr.bf16.mxu0 0
    %1933 = vmatpush1.bf16.msra.mxu0 %v1892
    %1934 = vmatprep.subr.bf16.mxu0 0
    %1935 = vmatpush1.bf16.msra.mxu0 %v1891
    %1936 = vmatprep.subr.bf16.mxu0 0
    %1937 = vmatpush1.bf16.msra.mxu0 %v1890
    %1938 = vmatprep.subr.bf16.mxu0 0
    %1939 = vmatpush2.bf16.msra.mxu0 %v1905
    %1940 = vmatprep.subr.bf16.mxu0 0
    %1941 = vmatpush2.bf16.msra.mxu0 %v1904
    %1942 = vmatprep.subr.bf16.mxu0 0
    %1943 = vmatpush2.bf16.msra.mxu0 %v1903
    %1944 = vmatprep.subr.bf16.mxu0 0
    %1945 = vmatpush2.bf16.msra.mxu0 %v1902
    %1946 = vmatprep.subr.bf16.mxu0 0
    %1947 = vmatpush2.bf16.msra.mxu0 %v1901
    %1948 = vmatprep.subr.bf16.mxu0 0
    %1949 = vmatpush2.bf16.msra.mxu0 %v1900
    %1950 = vmatprep.subr.bf16.mxu0 0
    %1951 = vmatpush2.bf16.msra.mxu0 %v1899
    %1952 = vmatprep.subr.bf16.mxu0 0
    %1953 = vmatpush2.bf16.msra.mxu0 %v1898
    %1954 = vmatprep.mubr.bf16.mxu0 %v1786
    %1955 = vmatmul.mubr.bf16.gmra.mxu0 %v1785
    %v1956 = vpop.f32.mrf.mxu0
    %v1957 = vadd.f32 %v1824, %v1956
    %v1958 = vpop.f32.mrf.mxu0
    %v1959 = vpop.f32.mrf.mxu0
    %v1960 = vadd.f32 %v1824, %v1959
    %v1961 = vpop.f32.mrf.mxu0
    %1962 = vdwg.mxu0
    %1963 = vst [vmem:[%s13] sm:$0xff] %v1957
    %1964 = vst [vmem:[%s13 + $0x8] sm:$0xff] %v1960
    // Predicated region
    $region78: #{_lambda_.1} parent=1 // pred_check
      _
    $region79: #{_lambda_.1} parent=1 // pred_check_branch
      %1966 = sbr.rel (0) target = $region81
    $region80: #{_lambda_.1} parent=1 // pred_region
      _
    $region81: #{_lambda_.1} parent=1 // pred_fallthru
      _
    // Predicated region
    $region82: #{_lambda_.1} parent=1 // pred_check
      _
    $region83: #{_lambda_.1} parent=1 // pred_check_branch
      %1968 = sbr.rel (0) target = $region85
    $region84: #{_lambda_.1} parent=1 // pred_region
      _
    $region85: #{_lambda_.1} parent=1 // pred_fallthru
      _
    // Predicated region
    $region86: #{_lambda_.1} parent=1 // pred_check
      _
    $region87: #{_lambda_.1} parent=1 // pred_check_branch
      %1970 = sbr.rel (0) target = $region89
    $region88: #{_lambda_.1} parent=1 // pred_region
      _
    $region89: #{_lambda_.1} parent=1 // pred_fallthru
      _
    // Predicated region
    $region90: #{_lambda_.1} parent=1 // pred_check
      _
    $region91: #{_lambda_.1} parent=1 // pred_check_branch
      %1972 = sbr.rel (0) target = $region93
    $region92: #{_lambda_.1} parent=1 // pred_region
      _
    $region93: #{_lambda_.1} parent=1 // pred_fallthru
      _
    // Predicated region
    $region94: #{_lambda_.1} parent=1 // pred_check
      _
    $region95: #{_lambda_.1} parent=1 // pred_check_branch
      %1974 = sbr.rel (0) target = $region97
    $region96: #{_lambda_.1} parent=1 // pred_region
      _
    $region97: #{_lambda_.1} parent=1 // pred_fallthru
      _
    // Predicated region
    $region98: #{_lambda_.1} parent=1 // pred_check
      _
    $region99: #{_lambda_.1} parent=1 // pred_check_branch
      %1976 = sbr.rel (0) target = $region101
    $region100: #{_lambda_.1} parent=1 // pred_region
      _
    $region101: #{_lambda_.1} parent=1 // pred_fallthru
      _
    %1977 = vsyncpa [#allocation4], 1
    %1978 = vsyncpa [#allocation6], 1
    %1979 = vsyncpa [#allocation9], 1
    %1980 = vsyncpa [#allocation12], 1

</llo_original>
